<compile_context>
chip_gen: v6e
topology: v6e:2x2x1
jax: 0.10.0
libtpu: 0.0.40
codegen_flags: <defaults>
</compile_context>

<pallas_src>
import functools

import jax
import jax.numpy as jnp
from jax.experimental import pallas as pl
from jax.experimental.pallas import tpu as pltpu


# ------------------------------- kernel -------------------------------------
def _rowlstm_kernel(ch, feat_ref, c_ref, w_ref, b_ref, out_ref):
    """One grid step: a slab of whole image rows flattened to (M, *).

    feat_ref: (M, K_pad)    im2col slab [x(w-1)|x(w)|x(w+1)|h(w-1)|h(w)|0-pad]
    c_ref:    (M, Ch)       cell state (f32)
    w_ref:    (K_pad, 4*Ch) fused weights, gate order (i, f, o, g)
    b_ref:    (1, 4*Ch)     pre-summed biases (f32)
    out_ref:  (M//2, 4*Ch)  lane-dense fold: [h|c] of rows [0, M/2) followed
                            (along lanes) by [h|c] of rows [M/2, M)
    """
    m = feat_ref.shape[0]
    mh = m // 2

    # Single fused MXU matmul -> all 4 gate pre-activations, f32 accumulation.
    pre = jnp.dot(feat_ref[...], w_ref[...], preferred_element_type=jnp.float32)
    pre = pre + b_ref[...]          # one hoisted VPU broadcast add (hidden by MXU)

    # i/f/o share one 96-lane slab; sigmoid(x) = 0.5*tanh(0.5*x) + 0.5 keeps a
    # single tanh-class EUP op per slab instead of exp+divide.
    sig = 0.5 * jnp.tanh(0.5 * pre[:, : 3 * ch]) + 0.5
    g = jnp.tanh(pre[:, 3 * ch:])
    i = sig[:, :ch]
    f = sig[:, ch: 2 * ch]
    o = sig[:, 2 * ch: 3 * ch]

    c = c_ref[...].astype(jnp.float32)
    c_new = f * c + i * g
    h_new = o * jnp.tanh(c_new)

    # Lane-dense store: fold the two halves of the block along lanes so the
    # stored block is 4*Ch (=128 here) wide -> full-width vst, no vst.msk.
    out_ref[...] = jnp.concatenate(
        [h_new[:mh], c_new[:mh], h_new[mh:], c_new[mh:]], axis=1
    ).astype(out_ref.dtype)


# ------------------------------ helpers --------------------------------------
def _round_up(v, m):
    return -(-v // m) * m


def _device_config():
    """(vmem_capacity_bytes, prefer_multi_block) with safe fallbacks."""
    vmem_cap = 128 * 1024 * 1024          # v5e / v6e physical VMEM
    prefer_multi = False                  # 1 TensorCore per chip
    try:
        vmem_cap = int(pltpu.get_tpu_info().vmem_capacity_bytes)
    except Exception:
        pass
    try:
        kind = jax.devices()[0].device_kind.lower()
        # v7x: 2 TensorCores / chip, 64 MiB VMEM -> want an even grid >= 2.
        prefer_multi = ("v7" in kind) or ("7x" in kind)
    except Exception:
        pass
    return vmem_cap, prefer_multi


def _pick_tile_rows(n_rows, width, bytes_per_image_row, budget, prefer_multi):
    """Largest whole-image-row tile under the VMEM budget.

    Multi-block tiles need (t*width) % 16 == 0 so both the input block and the
    folded output block (t*width//2 sublanes) satisfy the (8,128) rule; a
    single full block is always layout-legal.
    """
    cands = [t for t in range(1, n_rows + 1)
             if n_rows % t == 0 and ((t * width) % 16 == 0 or t == n_rows)]
    fitting = [t for t in cands if t * bytes_per_image_row <= budget]
    if fitting:
        if prefer_multi:
            multi = [t for t in fitting if n_rows // t >= 2]
            if multi:
                return max(multi)
        return max(fitting)
    return min(cands)   # nothing fits the budget: smallest legal tile


# ------------------------------ wrapper --------------------------------------
def row_lstm_cell_pallas(x_nchw, h_nchw, c_nchw, params, *, tile_rows=None,
                         compute_dtype=jnp.float32):
    """x: (N, Cin, H, W); h, c: (N, Ch, H, W). Returns (h_new, c_new) in NCHW.

    compute_dtype=jnp.bfloat16 halves HBM traffic / doubles MXU rate for the
    im2col slab and weights on v6e/v7x; cell state, bias and gate math stay
    f32 (loosen comparison tolerances when enabling it).
    """
    # TODO(synk): when this cell is driven once per image row inside a PixelRNN
    # scan, fuse the whole row recurrence into one pallas_call (weights and h/c
    # resident in VMEM scratch across grid steps) and accept channel-last
    # tensors to drop the per-call NCHW<->NHWC transposes.
    N, Cin, H, W = x_nchw.shape
    Ch = h_nchw.shape[1]
    R = N * H                     # number of image rows
    M = R * W                     # flattened pixels
    assert M % 2 == 0, "lane-dense output fold needs an even pixel count"
    # TODO(synk): odd N*H*W would need a non-folded (M, 2*Ch) store fallback.

    # ---- wrapper-side im2col (NCHW -> NHWC, per-row shifts, channel concat) --
    x_l = jnp.transpose(x_nchw, (0, 2, 3, 1))           # (N, H, W, Cin)
    h_l = jnp.transpose(h_nchw, (0, 2, 3, 1))           # (N, H, W, Ch)
    c_f = jnp.transpose(c_nchw, (0, 2, 3, 1)).reshape(M, Ch).astype(jnp.float32)

    def shift_right(a):   # position w holds a[w-1]; w == 0   -> 0 (left pad)
        return jnp.pad(a, ((0, 0), (0, 0), (1, 0), (0, 0)))[:, :, :W, :]

    def shift_left(a):    # position w holds a[w+1]; w == W-1 -> 0 (right pad)
        return jnp.pad(a, ((0, 0), (0, 0), (0, 1), (0, 0)))[:, :, 1:, :]

    K = 3 * Cin + 2 * Ch
    K_pad = max(_round_up(K, 8), 128) if K <= 128 else _round_up(K, 8)
    feat = jnp.concatenate(
        [shift_right(x_l), x_l, shift_left(x_l), shift_right(h_l), h_l],
        axis=-1).reshape(M, K)
    feat = jnp.pad(feat, ((0, 0), (0, K_pad - K))).astype(compute_dtype)

    # Fused weight: rows [x(w-1)|x(w)|x(w+1)|h(w-1)|h(w)|zero-pad], cols (i,f,o,g).
    # Masked-'B' U conv: the w+1 tap of U is identically zero, so it is omitted.
    gates = ("i", "f", "o", "g")

    def tap(name, k):     # (Cout, Cin, 1, 3) -> (Cin, Cout)
        return jnp.transpose(params[name][:, :, 0, k], (1, 0))

    def kblock(prefix, k):
        return jnp.concatenate([tap(f"{prefix}_{g}_w", k) for g in gates], axis=1)

    w_fused = jnp.concatenate(
        [kblock("W", 0), kblock("W", 1), kblock("W", 2),
         kblock("U", 0), kblock("U", 1)], axis=0)                 # (K, 4*Ch)
    w_fused = jnp.pad(w_fused, ((0, K_pad - K), (0, 0))).astype(compute_dtype)

    bias = jnp.concatenate(
        [params[f"W_{g}_b"] + params[f"U_{g}_b"] + params[f"b_{g}"]
         for g in gates]).reshape(1, 4 * Ch).astype(jnp.float32)

    # ---- generation-aware tiling --------------------------------------------
    vmem_cap, prefer_multi = _device_config()
    vmem_limit = min(vmem_cap // 2, 96 * 1024 * 1024)
    isz = jnp.dtype(compute_dtype).itemsize
    feat_row = W * K_pad * isz                  # per image row, per buffer
    c_row = W * max(Ch, 128) * 4                # lane-padded to 128 in VMEM
    out_row = (W * 4 * Ch * 4) // 2             # folded output block
    tmp_row = W * 14 * Ch * 4                   # pre-activations + gate temps
    per_row = 2 * (feat_row + c_row) + 2 * out_row + tmp_row
    if tile_rows is None:
        tile_rows = _pick_tile_rows(R, W, per_row, int(vmem_limit * 0.75),
                                    prefer_multi)
    assert R % tile_rows == 0
    weight_bytes = 2 * (K_pad * 4 * Ch * isz + 4 * Ch * 4)
    vmem_limit = min(max(vmem_limit,
                         tile_rows * per_row + weight_bytes + (1 << 20)),
                     int(vmem_cap * 0.9))

    num_blocks = R // tile_rows
    m_blk = tile_rows * W
    mh_blk = m_blk // 2

    kernel = functools.partial(_rowlstm_kernel, Ch)

    out_flat = pl.pallas_call(
        kernel,
        out_shape=jax.ShapeDtypeStruct((M // 2, 4 * Ch), jnp.float32),
        grid_spec=pltpu.PrefetchScalarGridSpec(
            num_scalar_prefetch=0,
            grid=(num_blocks,),
            in_specs=[
                pl.BlockSpec((m_blk, K_pad), lambda r: (r, 0)),   # im2col slab
                pl.BlockSpec((m_blk, Ch), lambda r: (r, 0)),      # cell state
                pl.BlockSpec((K_pad, 4 * Ch), lambda r: (0, 0)),  # fused weight
                pl.BlockSpec((1, 4 * Ch), lambda r: (0, 0)),      # bias
            ],
            out_specs=pl.BlockSpec((mh_blk, 4 * Ch), lambda r: (r, 0)),
        ),
        compiler_params=pltpu.CompilerParams(
            dimension_semantics=("parallel",),
            vmem_limit_bytes=int(vmem_limit),
        ),
    )(feat, c_f, w_fused, bias)

    # ---- unfold the lane-dense output back to (M, 2*Ch) ---------------------
    out_b = out_flat.reshape(num_blocks, mh_blk, 4 * Ch)
    packed = jnp.concatenate([out_b[:, :, :2 * Ch], out_b[:, :, 2 * Ch:]],
                             axis=1).reshape(M, 2 * Ch)
    h_new = packed[:, :Ch]
    c_new = packed[:, Ch:]

    def to_nchw(a):
        return jnp.transpose(a.reshape(N, H, W, Ch), (0, 3, 1, 2))

    return to_nchw(h_new), to_nchw(c_new)


# ------------------------- pure-JAX reference --------------------------------
def _conv1x3(x_nchw, w_oihw, b):
    out = jax.lax.conv_general_dilated(
        x_nchw, w_oihw, window_strides=(1, 1), padding=((0, 0), (1, 1)),
        dimension_numbers=("NCHW", "OIHW", "NCHW"),
        precision=jax.lax.Precision.HIGHEST)
    return out + b[None, :, None, None]


def row_lstm_cell_ref(x, h, c, params):
    def gate(g):
        return (_conv1x3(x, params[f"W_{g}_w"], params[f"W_{g}_b"])
                + _conv1x3(h, params[f"U_{g}_w"], params[f"U_{g}_b"])
                + params[f"b_{g}"][None, :, None, None])
    i = jax.nn.sigmoid(gate("i"))
    f = jax.nn.sigmoid(gate("f"))
    o = jax.nn.sigmoid(gate("o"))
    g = jnp.tanh(gate("g"))
    c_new = f * c + i * g
    h_new = o * jnp.tanh(c_new)
    return h_new, c_new


# --------------------------------- main --------------------------------------
if __name__ == "__main__":
    input_size, hidden_size = 4, 32
    N, H, W = 2, 16, 16

    key = jax.random.PRNGKey(0)
    keys = iter(jax.random.split(key, 32))

    # MaskedConv2d('B', kernel (1,3)): mask zeroes tap index 2 (the right tap).
    u_mask = jnp.array([1.0, 1.0, 0.0]).reshape(1, 1, 1, 3)

    params = {}
    for g in ("i", "f", "o", "g"):
        params[f"W_{g}_w"] = 0.1 * jax.random.normal(
            next(keys), (hidden_size, input_size, 1, 3), jnp.float32)
        params[f"W_{g}_b"] = 0.1 * jax.random.normal(
            next(keys), (hidden_size,), jnp.float32)
        params[f"U_{g}_w"] = 0.1 * jax.random.normal(
            next(keys), (hidden_size, hidden_size, 1, 3), jnp.float32) * u_mask
        params[f"U_{g}_b"] = 0.1 * jax.random.normal(
            next(keys), (hidden_size,), jnp.float32)
        # nn.Parameter(torch.zeros(hidden_size)) in __init__
        params[f"b_{g}"] = jnp.zeros((hidden_size,), jnp.float32)

    x = jax.random.normal(next(keys), (N, input_size, H, W), jnp.float32)
    h0 = jax.random.normal(next(keys), (N, hidden_size, H, W), jnp.float32)
    c0 = jax.random.normal(next(keys), (N, hidden_size, H, W), jnp.float32)

    h_new, c_new = row_lstm_cell_pallas(x, h0, c0, params)
    jax.block_until_ready((h_new, c_new))

    h_ref, c_ref = row_lstm_cell_ref(x, h0, c0, params)
    # Tolerance covers MXU f32 multi-pass vs XLA conv accumulation-order diffs
    # and the tanh-based sigmoid; semantic errors would be orders larger.
    assert jnp.allclose(h_new, h_ref, atol=1e-4, rtol=1e-4), "h mismatch"
    assert jnp.allclose(c_new, c_ref, atol=1e-4, rtol=1e-4), "c mismatch"

    print("KERNEL_OK")
</pallas_src>

<mosaic_0001>
module attributes {stable_mosaic.version = 11 : i64} {
  func.func @_rowlstm_kernel(%arg0: i32, %arg1: memref<512x128xf32, #tpu.memory_space<vmem>>, %arg2: memref<512x32xf32, #tpu.memory_space<vmem>>, %arg3: memref<128x128xf32, #tpu.memory_space<vmem>>, %arg4: memref<1x128xf32, #tpu.memory_space<vmem>>, %arg5: memref<256x128xf32, #tpu.memory_space<vmem>>) attributes {dimension_semantics = [#tpu.dimension_semantics<parallel>], iteration_bounds = array<i64: 1>, scalar_prefetch = 0 : i64, scratch_operands = 0 : i64, tpu.core_type = #tpu.core_type<tc>, window_params = [{transform_indices = @transform_0, window_bounds = array<i64: 512, 128>}, {transform_indices = @transform_1, window_bounds = array<i64: 512, 32>}, {pipeline_mode = #tpu.pipeline_mode<synchronous>, transform_indices = @transform_2, window_bounds = array<i64: 128, 128>}, {pipeline_mode = #tpu.pipeline_mode<synchronous>, transform_indices = @transform_3, window_bounds = array<i64: 1, 128>}, {transform_indices = @transform_4, window_bounds = array<i64: 256, 128>}]} {
    %c0 = arith.constant 0 : index
    %c0_0 = arith.constant 0 : index
    %0 = vector.load %arg1[%c0, %c0_0] : memref<512x128xf32, #tpu.memory_space<vmem>>, vector<512x128xf32>
    %c0_1 = arith.constant 0 : index
    %c0_2 = arith.constant 0 : index
    %1 = vector.load %arg3[%c0_1, %c0_2] : memref<128x128xf32, #tpu.memory_space<vmem>>, vector<128x128xf32>
    %cst = arith.constant dense<0.000000e+00> : vector<512x128xf32>
    %2 = tpu.matmul %0, %1, %cst {dimension_numbers = #tpu.dot_dimension_numbers<[1], [0], [0], [1], [0, 0, 1, 1], [], []>} : vector<512x128xf32>, vector<128x128xf32>, vector<512x128xf32> -> vector<512x128xf32>
    %c0_3 = arith.constant 0 : index
    %c0_4 = arith.constant 0 : index
    %3 = vector.load %arg4[%c0_3, %c0_4] : memref<1x128xf32, #tpu.memory_space<vmem>>, vector<1x128xf32>
    %4 = vector.broadcast %3 : vector<1x128xf32> to vector<512x128xf32>
    %5 = arith.addf %2, %4 : vector<512x128xf32>
    %6 = vector.extract_strided_slice %5 {offsets = [0, 0], sizes = [512, 96], strides = [1, 1]} : vector<512x128xf32> to vector<512x96xf32>
    %cst_5 = arith.constant 5.000000e-01 : f32
    %7 = vector.broadcast %cst_5 : f32 to vector<512x96xf32>
    %8 = arith.mulf %7, %6 : vector<512x96xf32>
    %9 = math.tanh %8 : vector<512x96xf32>
    %cst_6 = arith.constant 5.000000e-01 : f32
    %10 = vector.broadcast %cst_6 : f32 to vector<512x96xf32>
    %11 = arith.mulf %10, %9 : vector<512x96xf32>
    %cst_7 = arith.constant 5.000000e-01 : f32
    %12 = vector.broadcast %cst_7 : f32 to vector<512x96xf32>
    %13 = arith.addf %11, %12 : vector<512x96xf32>
    %14 = vector.extract_strided_slice %5 {offsets = [0, 96], sizes = [512, 32], strides = [1, 1]} : vector<512x128xf32> to vector<512x32xf32>
    %15 = math.tanh %14 : vector<512x32xf32>
    %16 = vector.extract_strided_slice %13 {offsets = [0, 0], sizes = [512, 32], strides = [1, 1]} : vector<512x96xf32> to vector<512x32xf32>
    %17 = vector.extract_strided_slice %13 {offsets = [0, 32], sizes = [512, 32], strides = [1, 1]} : vector<512x96xf32> to vector<512x32xf32>
    %18 = vector.extract_strided_slice %13 {offsets = [0, 64], sizes = [512, 32], strides = [1, 1]} : vector<512x96xf32> to vector<512x32xf32>
    %c0_8 = arith.constant 0 : index
    %c0_9 = arith.constant 0 : index
    %19 = vector.load %arg2[%c0_8, %c0_9] : memref<512x32xf32, #tpu.memory_space<vmem>>, vector<512x32xf32>
    %20 = arith.mulf %17, %19 : vector<512x32xf32>
    %21 = arith.mulf %16, %15 : vector<512x32xf32>
    %22 = arith.addf %20, %21 : vector<512x32xf32>
    %23 = math.tanh %22 : vector<512x32xf32>
    %24 = arith.mulf %18, %23 : vector<512x32xf32>
    %25 = vector.extract_strided_slice %24 {offsets = [0, 0], sizes = [256, 32], strides = [1, 1]} : vector<512x32xf32> to vector<256x32xf32>
    %26 = vector.extract_strided_slice %22 {offsets = [0, 0], sizes = [256, 32], strides = [1, 1]} : vector<512x32xf32> to vector<256x32xf32>
    %27 = vector.extract_strided_slice %24 {offsets = [256, 0], sizes = [256, 32], strides = [1, 1]} : vector<512x32xf32> to vector<256x32xf32>
    %28 = vector.extract_strided_slice %22 {offsets = [256, 0], sizes = [256, 32], strides = [1, 1]} : vector<512x32xf32> to vector<256x32xf32>
    %29 = tpu.concatenate %25, %26, %27, %28 in 1 : vector<256x32xf32>, vector<256x32xf32>, vector<256x32xf32>, vector<256x32xf32> -> vector<256x128xf32>
    %c0_10 = arith.constant 0 : index
    %c0_11 = arith.constant 0 : index
    %30 = vector.load %arg5[%c0_10, %c0_11] : memref<256x128xf32, #tpu.memory_space<vmem>>, vector<256x128xf32>
    tpu.vector_store %arg5[%c0_10, %c0_11], %29 {strides = array<i32>} : memref<256x128xf32, #tpu.memory_space<vmem>>, vector<256x128xf32>,
    return
  }
  func.func @transform_0(%arg0: i32) -> (i32, i32) {
    %c0_i32 = arith.constant 0 : i32
    %c0_i32_0 = arith.constant 0 : i32
    return %arg0, %c0_i32 : i32, i32
  }
  func.func @transform_1(%arg0: i32) -> (i32, i32) {
    %c0_i32 = arith.constant 0 : i32
    %c0_i32_0 = arith.constant 0 : i32
    return %arg0, %c0_i32 : i32, i32
  }
  func.func @transform_2(%arg0: i32) -> (i32, i32) {
    %c0_i32 = arith.constant 0 : i32
    %c0_i32_0 = arith.constant 0 : i32
    %c0_i32_1 = arith.constant 0 : i32
    return %c0_i32, %c0_i32_0 : i32, i32
  }
  func.func @transform_3(%arg0: i32) -> (i32, i32) {
    %c0_i32 = arith.constant 0 : i32
    %c0_i32_0 = arith.constant 0 : i32
    %c0_i32_1 = arith.constant 0 : i32
    return %c0_i32, %c0_i32_0 : i32, i32
  }
  func.func @transform_4(%arg0: i32) -> (i32, i32) {
    %c0_i32 = arith.constant 0 : i32
    %c0_i32_0 = arith.constant 0 : i32
    return %arg0, %c0_i32 : i32, i32
  }
}

</mosaic_0001>

<llo_original>
// kernel: tpu_custom_call.1
$region0: #{tpu_custom_call.1}
  #allocation0 [shape = 'u32[]', space=smem, size = 0x4, offset = 0x4, fixed_abs, tag = 'smem constant byte address 0x4 - core index']
  #allocation1 [shape = 'u32[144,128]{1,0:T(1,128)}', space=vmem, size = 0x12000, scoped, tag = 'internal scratch']
  %s0 = inlined_call_operand.vmem [shape: f32[512,128], index: 0, kind: input, shape index: {}]
  %s1 = inlined_call_operand.vmem [shape: f32[512,32], index: 1, kind: input, shape index: {}]
  %s2 = inlined_call_operand.vmem [shape: f32[128,128], index: 2, kind: input, shape index: {}]
  %s3 = inlined_call_operand.hbm [shape: f32[1,128], index: 3, kind: input, shape index: {}]
  %s4 = inlined_call_operand.hbm [shape: f32[256,128], index: 4, kind: output, shape index: {}]
  %s5 = sld [smem:[#allocation0]]
  $region30: #{tpu_custom_call.1} parent=0
    _
  %s7 = ssub.s32 1, %s5
  %s8 = scalar_select 0, %s7, %s5
  $region1: #{tpu_custom_call.1} parent=0
    #allocation2 [shape = 'u8[512]{0}', space=vmem, size = 0x400, scoped, tag = 'input window, operand 3, single buffered']
    #allocation3 [shape = 's32[1]{0}', space=sflag, size = 0x4, scoped, tag = 'scoped memory for tpu_custom_call.1']
    #allocation4 [shape = 's32[1]{0}', space=sflag, size = 0x4, scoped, tag = 'scoped memory for tpu_custom_call.1']
    #allocation5 [shape = 'u8[131072]{0}', space=vmem, size = 0x20000, scoped, tag = 'output window, operand 0, single buffered']
    %9 = vsyncpa [#allocation3], 0
    %10 = vsyncpa [#allocation4], 0
    // Predicated region
    $region2: #{tpu_custom_call.1} parent=1 // pred_check
      _
    $region3: #{tpu_custom_call.1} parent=1 // pred_check_branch
      %12 = sbr.rel (0) target = $region5
    $region4: #{tpu_custom_call.1} parent=1 // pred_region
      _
    $region5: #{tpu_custom_call.1} parent=1 // pred_fallthru
      _
    // Predicated region
    $region6: #{tpu_custom_call.1} parent=1 // pred_check
      _
    $region7: #{tpu_custom_call.1} parent=1 // pred_check_branch
      %14 = sbr.rel (0) target = $region9
    $region8: #{tpu_custom_call.1} parent=1 // pred_region
      _
    $region9: #{tpu_custom_call.1} parent=1 // pred_fallthru
      _
    // Predicated region
    $region10: #{tpu_custom_call.1} parent=1 // pred_check
      _
    $region11: #{tpu_custom_call.1} parent=1 // pred_check_branch
      %16 = sbr.rel (0) target = $region13
    $region12: #{tpu_custom_call.1} parent=1 // pred_region
      _
    $region13: #{tpu_custom_call.1} parent=1 // pred_fallthru
      _
    // Predicated region
    $region14: #{tpu_custom_call.1} parent=1 // pred_check
      _
    $region15: #{tpu_custom_call.1} parent=1 // pred_check_branch
      %18 = sbr.rel (0) target = $region17
    $region16: #{tpu_custom_call.1} parent=1 // pred_region
      %s20 = ssub.s32 16, 16
      %21 = vsyncadd [#allocation3], %s20
      %s23 = sshll.u32 [#allocation2], 4
      %s24 = int_to_ptr.vmem [resolvable:$true] %s23
      %26 = dma.hbm_to_vmem [thread:$0]  %s3, 16, %s24, [#allocation3]
    $region17: #{tpu_custom_call.1} parent=1 // pred_fallthru
      _
    // Predicated region
    $region18: #{tpu_custom_call.1} parent=1 // pred_check
      _
    $region19: #{tpu_custom_call.1} parent=1 // pred_check_branch
      %28 = sbr.rel (0) target = $region21
    $region20: #{tpu_custom_call.1} parent=1 // pred_region
      %29 = dma.done [#allocation3], 16
    $region21: #{tpu_custom_call.1} parent=1 // pred_fallthru
      _
    %v30 = vld [vmem:[%s0] sm:$0xff]
    %v31 = vld [vmem:[%s0 + $0x8] sm:$0xff]
    %v32 = vld [vmem:[%s0 + $0x10] sm:$0xff]
    %v33 = vld [vmem:[%s0 + $0x18] sm:$0xff]
    %v34 = vld [vmem:[%s0 + $0x20] sm:$0xff]
    %v35 = vld [vmem:[%s0 + $0x28] sm:$0xff]
    %v36 = vld [vmem:[%s0 + $0x30] sm:$0xff]
    %v37 = vld [vmem:[%s0 + $0x38] sm:$0xff]
    %v38 = vld [vmem:[%s0 + $0x40] sm:$0xff]
    %v39 = vld [vmem:[%s0 + $0x48] sm:$0xff]
    %v40 = vld [vmem:[%s0 + $0x50] sm:$0xff]
    %v41 = vld [vmem:[%s0 + $0x58] sm:$0xff]
    %v42 = vld [vmem:[%s0 + $0x60] sm:$0xff]
    %v43 = vld [vmem:[%s0 + $0x68] sm:$0xff]
    %v44 = vld [vmem:[%s0 + $0x70] sm:$0xff]
    %v45 = vld [vmem:[%s0 + $0x78] sm:$0xff]
    %v46 = vld [vmem:[%s0 + $0x80] sm:$0xff]
    %v47 = vld [vmem:[%s0 + $0x88] sm:$0xff]
    %v48 = vld [vmem:[%s0 + $0x90] sm:$0xff]
    %v49 = vld [vmem:[%s0 + $0x98] sm:$0xff]
    %v50 = vld [vmem:[%s0 + $0xa0] sm:$0xff]
    %v51 = vld [vmem:[%s0 + $0xa8] sm:$0xff]
    %v52 = vld [vmem:[%s0 + $0xb0] sm:$0xff]
    %v53 = vld [vmem:[%s0 + $0xb8] sm:$0xff]
    %v54 = vld [vmem:[%s0 + $0xc0] sm:$0xff]
    %v55 = vld [vmem:[%s0 + $0xc8] sm:$0xff]
    %v56 = vld [vmem:[%s0 + $0xd0] sm:$0xff]
    %v57 = vld [vmem:[%s0 + $0xd8] sm:$0xff]
    %v58 = vld [vmem:[%s0 + $0xe0] sm:$0xff]
    %v59 = vld [vmem:[%s0 + $0xe8] sm:$0xff]
    %v60 = vld [vmem:[%s0 + $0xf0] sm:$0xff]
    %v61 = vld [vmem:[%s0 + $0xf8] sm:$0xff]
    %v62 = vld [vmem:[%s0 + $0x100] sm:$0xff]
    %v63 = vld [vmem:[%s0 + $0x108] sm:$0xff]
    %v64 = vld [vmem:[%s0 + $0x110] sm:$0xff]
    %v65 = vld [vmem:[%s0 + $0x118] sm:$0xff]
    %v66 = vld [vmem:[%s0 + $0x120] sm:$0xff]
    %v67 = vld [vmem:[%s0 + $0x128] sm:$0xff]
    %v68 = vld [vmem:[%s0 + $0x130] sm:$0xff]
    %v69 = vld [vmem:[%s0 + $0x138] sm:$0xff]
    %v70 = vld [vmem:[%s0 + $0x140] sm:$0xff]
    %v71 = vld [vmem:[%s0 + $0x148] sm:$0xff]
    %v72 = vld [vmem:[%s0 + $0x150] sm:$0xff]
    %v73 = vld [vmem:[%s0 + $0x158] sm:$0xff]
    %v74 = vld [vmem:[%s0 + $0x160] sm:$0xff]
    %v75 = vld [vmem:[%s0 + $0x168] sm:$0xff]
    %v76 = vld [vmem:[%s0 + $0x170] sm:$0xff]
    %v77 = vld [vmem:[%s0 + $0x178] sm:$0xff]
    %v78 = vld [vmem:[%s0 + $0x180] sm:$0xff]
    %v79 = vld [vmem:[%s0 + $0x188] sm:$0xff]
    %v80 = vld [vmem:[%s0 + $0x190] sm:$0xff]
    %v81 = vld [vmem:[%s0 + $0x198] sm:$0xff]
    %v82 = vld [vmem:[%s0 + $0x1a0] sm:$0xff]
    %v83 = vld [vmem:[%s0 + $0x1a8] sm:$0xff]
    %v84 = vld [vmem:[%s0 + $0x1b0] sm:$0xff]
    %v85 = vld [vmem:[%s0 + $0x1b8] sm:$0xff]
    %v86 = vld [vmem:[%s0 + $0x1c0] sm:$0xff]
    %v87 = vld [vmem:[%s0 + $0x1c8] sm:$0xff]
    %v88 = vld [vmem:[%s0 + $0x1d0] sm:$0xff]
    %v89 = vld [vmem:[%s0 + $0x1d8] sm:$0xff]
    %v90 = vld [vmem:[%s0 + $0x1e0] sm:$0xff]
    %v91 = vld [vmem:[%s0 + $0x1e8] sm:$0xff]
    %v92 = vld [vmem:[%s0 + $0x1f0] sm:$0xff]
    %v93 = vld [vmem:[%s0 + $0x1f8] sm:$0xff]
    %v94 = vld [vmem:[%s2] sm:$0xff]
    %v95 = vld [vmem:[%s2 + $0x8] sm:$0xff]
    %v96 = vld [vmem:[%s2 + $0x10] sm:$0xff]
    %v97 = vld [vmem:[%s2 + $0x18] sm:$0xff]
    %v98 = vld [vmem:[%s2 + $0x20] sm:$0xff]
    %v99 = vld [vmem:[%s2 + $0x28] sm:$0xff]
    %v100 = vld [vmem:[%s2 + $0x30] sm:$0xff]
    %v101 = vld [vmem:[%s2 + $0x38] sm:$0xff]
    %v102 = vld [vmem:[%s2 + $0x40] sm:$0xff]
    %v103 = vld [vmem:[%s2 + $0x48] sm:$0xff]
    %v104 = vld [vmem:[%s2 + $0x50] sm:$0xff]
    %v105 = vld [vmem:[%s2 + $0x58] sm:$0xff]
    %v106 = vld [vmem:[%s2 + $0x60] sm:$0xff]
    %v107 = vld [vmem:[%s2 + $0x68] sm:$0xff]
    %v108 = vld [vmem:[%s2 + $0x70] sm:$0xff]
    %v109 = vld [vmem:[%s2 + $0x78] sm:$0xff]
    %v110 = vld [vmem:[#allocation2] sm:$0x1]
    %v112 = vlaneseq
    %v113 = vshrl.u32 %v112, 7
    %v114 = vsub.s32 0, %v113
    %v115 = vrot.slane %v110, %v114
    %117 = vmatprep.subr.mxu0 0.0
    %118 = vmatpush1.msra.mxu0 %v109
    %119 = vmatprep.subr.mxu0 0.0
    %120 = vmatpush1.msra.mxu0 %v108
    %121 = vmatprep.subr.mxu0 0.0
    %122 = vmatpush1.msra.mxu0 %v107
    %123 = vmatprep.subr.mxu0 0.0
    %124 = vmatpush1.msra.mxu0 %v106
    %125 = vmatprep.subr.mxu0 0.0
    %126 = vmatpush1.msra.mxu0 %v105
    %127 = vmatprep.subr.mxu0 0.0
    %128 = vmatpush1.msra.mxu0 %v104
    %129 = vmatprep.subr.mxu0 0.0
    %130 = vmatpush1.msra.mxu0 %v103
    %131 = vmatprep.subr.mxu0 0.0
    %132 = vmatpush1.msra.mxu0 %v102
    %133 = vmatprep.subr.mxu0 0.0
    %134 = vmatpush1.msra.mxu0 %v101
    %135 = vmatprep.subr.mxu0 0.0
    %136 = vmatpush1.msra.mxu0 %v100
    %137 = vmatprep.subr.mxu0 0.0
    %138 = vmatpush1.msra.mxu0 %v99
    %139 = vmatprep.subr.mxu0 0.0
    %140 = vmatpush1.msra.mxu0 %v98
    %141 = vmatprep.subr.mxu0 0.0
    %142 = vmatpush1.msra.mxu0 %v97
    %143 = vmatprep.subr.mxu0 0.0
    %144 = vmatpush1.msra.mxu0 %v96
    %145 = vmatprep.subr.mxu0 0.0
    %146 = vmatpush1.msra.mxu0 %v95
    %147 = vmatprep.subr.mxu0 0.0
    %148 = vmatpush1.msra.mxu0 %v94
    %149 = vmatprep.subr.mxu0 0.0
    %150 = vmatpush2.msra.mxu0 0.0
    %151 = vmatprep.subr.mxu0 0.0
    %152 = vmatpush2.msra.mxu0 0.0
    %153 = vmatprep.subr.mxu0 0.0
    %154 = vmatpush2.msra.mxu0 0.0
    %155 = vmatprep.subr.mxu0 0.0
    %156 = vmatpush2.msra.mxu0 0.0
    %157 = vmatprep.subr.mxu0 0.0
    %158 = vmatpush2.msra.mxu0 0.0
    %159 = vmatprep.subr.mxu0 0.0
    %160 = vmatpush2.msra.mxu0 0.0
    %161 = vmatprep.subr.mxu0 0.0
    %162 = vmatpush2.msra.mxu0 0.0
    %163 = vmatprep.subr.mxu0 0.0
    %164 = vmatpush2.msra.mxu0 0.0
    %165 = vmatprep.subr.mxu0 0.0
    %166 = vmatpush2.msra.mxu0 0.0
    %167 = vmatprep.subr.mxu0 0.0
    %168 = vmatpush2.msra.mxu0 0.0
    %169 = vmatprep.subr.mxu0 0.0
    %170 = vmatpush2.msra.mxu0 0.0
    %171 = vmatprep.subr.mxu0 0.0
    %172 = vmatpush2.msra.mxu0 0.0
    %173 = vmatprep.subr.mxu0 0.0
    %174 = vmatpush2.msra.mxu0 0.0
    %175 = vmatprep.subr.mxu0 0.0
    %176 = vmatpush2.msra.mxu0 0.0
    %177 = vmatprep.subr.mxu0 0.0
    %178 = vmatpush2.msra.mxu0 0.0
    %179 = vmatprep.subr.mxu0 0.0
    %180 = vmatpush2.msra.mxu0 0.0
    %181 = vmatprep.mubr.f32.mxu0 0.0
    %182 = vmatmul.mubr.f32.gmra.mxu0 %v30
    %v183 = vpop.f32.mrf.mxu0
    %v184 = vadd.f32 %v115, %v183
    %v185 = vpop.f32.mrf.mxu0
    %186 = vmatprep.mubr.f32.mxu0 0.0
    %187 = vmatmul.mubr.f32.gmra.mxu0 %v31
    %v188 = vpop.f32.mrf.mxu0
    %v189 = vadd.f32 %v115, %v188
    %v190 = vpop.f32.mrf.mxu0
    %191 = vmatprep.mubr.f32.mxu0 0.0
    %192 = vmatmul.mubr.f32.gmra.mxu0 %v32
    %v193 = vpop.f32.mrf.mxu0
    %v194 = vadd.f32 %v115, %v193
    %v195 = vpop.f32.mrf.mxu0
    %196 = vmatprep.mubr.f32.mxu0 0.0
    %197 = vmatmul.mubr.f32.gmra.mxu0 %v33
    %v198 = vpop.f32.mrf.mxu0
    %v199 = vadd.f32 %v115, %v198
    %v200 = vpop.f32.mrf.mxu0
    %201 = vmatprep.mubr.f32.mxu0 0.0
    %202 = vmatmul.mubr.f32.gmra.mxu0 %v34
    %v203 = vpop.f32.mrf.mxu0
    %v204 = vadd.f32 %v115, %v203
    %v205 = vpop.f32.mrf.mxu0
    %206 = vmatprep.mubr.f32.mxu0 0.0
    %207 = vmatmul.mubr.f32.gmra.mxu0 %v35
    %v208 = vpop.f32.mrf.mxu0
    %v209 = vadd.f32 %v115, %v208
    %v210 = vpop.f32.mrf.mxu0
    %211 = vmatprep.mubr.f32.mxu0 0.0
    %212 = vmatmul.mubr.f32.gmra.mxu0 %v36
    %v213 = vpop.f32.mrf.mxu0
    %v214 = vadd.f32 %v115, %v213
    %v215 = vpop.f32.mrf.mxu0
    %216 = vmatprep.mubr.f32.mxu0 0.0
    %217 = vmatmul.mubr.f32.gmra.mxu0 %v37
    %v218 = vpop.f32.mrf.mxu0
    %v219 = vadd.f32 %v115, %v218
    %v220 = vpop.f32.mrf.mxu0
    %221 = vmatprep.mubr.f32.mxu0 0.0
    %222 = vmatmul.mubr.f32.gmra.mxu0 %v38
    %v223 = vpop.f32.mrf.mxu0
    %v224 = vadd.f32 %v115, %v223
    %v225 = vpop.f32.mrf.mxu0
    %226 = vmatprep.mubr.f32.mxu0 0.0
    %227 = vmatmul.mubr.f32.gmra.mxu0 %v39
    %v228 = vpop.f32.mrf.mxu0
    %v229 = vadd.f32 %v115, %v228
    %v230 = vpop.f32.mrf.mxu0
    %231 = vmatprep.mubr.f32.mxu0 0.0
    %232 = vmatmul.mubr.f32.gmra.mxu0 %v40
    %v233 = vpop.f32.mrf.mxu0
    %v234 = vadd.f32 %v115, %v233
    %v235 = vpop.f32.mrf.mxu0
    %236 = vmatprep.mubr.f32.mxu0 0.0
    %237 = vmatmul.mubr.f32.gmra.mxu0 %v41
    %v238 = vpop.f32.mrf.mxu0
    %v239 = vadd.f32 %v115, %v238
    %v240 = vpop.f32.mrf.mxu0
    %241 = vmatprep.mubr.f32.mxu0 0.0
    %242 = vmatmul.mubr.f32.gmra.mxu0 %v42
    %v243 = vpop.f32.mrf.mxu0
    %v244 = vadd.f32 %v115, %v243
    %v245 = vpop.f32.mrf.mxu0
    %246 = vmatprep.mubr.f32.mxu0 0.0
    %247 = vmatmul.mubr.f32.gmra.mxu0 %v43
    %v248 = vpop.f32.mrf.mxu0
    %v249 = vadd.f32 %v115, %v248
    %v250 = vpop.f32.mrf.mxu0
    %251 = vmatprep.mubr.f32.mxu0 0.0
    %252 = vmatmul.mubr.f32.gmra.mxu0 %v44
    %v253 = vpop.f32.mrf.mxu0
    %v254 = vadd.f32 %v115, %v253
    %v255 = vpop.f32.mrf.mxu0
    %256 = vmatprep.mubr.f32.mxu0 0.0
    %257 = vmatmul.mubr.f32.gmra.mxu0 %v45
    %v258 = vpop.f32.mrf.mxu0
    %v259 = vadd.f32 %v115, %v258
    %v260 = vpop.f32.mrf.mxu0
    %261 = vmatprep.mubr.f32.mxu0 0.0
    %262 = vmatmul.mubr.f32.gmra.mxu0 %v46
    %v263 = vpop.f32.mrf.mxu0
    %v264 = vadd.f32 %v115, %v263
    %v265 = vpop.f32.mrf.mxu0
    %266 = vmatprep.mubr.f32.mxu0 0.0
    %267 = vmatmul.mubr.f32.gmra.mxu0 %v47
    %v268 = vpop.f32.mrf.mxu0
    %v269 = vadd.f32 %v115, %v268
    %v270 = vpop.f32.mrf.mxu0
    %271 = vmatprep.mubr.f32.mxu0 0.0
    %272 = vmatmul.mubr.f32.gmra.mxu0 %v48
    %v273 = vpop.f32.mrf.mxu0
    %v274 = vadd.f32 %v115, %v273
    %v275 = vpop.f32.mrf.mxu0
    %276 = vmatprep.mubr.f32.mxu0 0.0
    %277 = vmatmul.mubr.f32.gmra.mxu0 %v49
    %v278 = vpop.f32.mrf.mxu0
    %v279 = vadd.f32 %v115, %v278
    %v280 = vpop.f32.mrf.mxu0
    %281 = vmatprep.mubr.f32.mxu0 0.0
    %282 = vmatmul.mubr.f32.gmra.mxu0 %v50
    %v283 = vpop.f32.mrf.mxu0
    %v284 = vadd.f32 %v115, %v283
    %v285 = vpop.f32.mrf.mxu0
    %286 = vmatprep.mubr.f32.mxu0 0.0
    %287 = vmatmul.mubr.f32.gmra.mxu0 %v51
    %v288 = vpop.f32.mrf.mxu0
    %v289 = vadd.f32 %v115, %v288
    %v290 = vpop.f32.mrf.mxu0
    %291 = vmatprep.mubr.f32.mxu0 0.0
    %292 = vmatmul.mubr.f32.gmra.mxu0 %v52
    %v293 = vpop.f32.mrf.mxu0
    %v294 = vadd.f32 %v115, %v293
    %v295 = vpop.f32.mrf.mxu0
    %296 = vmatprep.mubr.f32.mxu0 0.0
    %297 = vmatmul.mubr.f32.gmra.mxu0 %v53
    %v298 = vpop.f32.mrf.mxu0
    %v299 = vadd.f32 %v115, %v298
    %v300 = vpop.f32.mrf.mxu0
    %301 = vmatprep.mubr.f32.mxu0 0.0
    %302 = vmatmul.mubr.f32.gmra.mxu0 %v54
    %v303 = vpop.f32.mrf.mxu0
    %v304 = vadd.f32 %v115, %v303
    %v305 = vpop.f32.mrf.mxu0
    %306 = vmatprep.mubr.f32.mxu0 0.0
    %307 = vmatmul.mubr.f32.gmra.mxu0 %v55
    %v308 = vpop.f32.mrf.mxu0
    %v309 = vadd.f32 %v115, %v308
    %v310 = vpop.f32.mrf.mxu0
    %311 = vmatprep.mubr.f32.mxu0 0.0
    %312 = vmatmul.mubr.f32.gmra.mxu0 %v56
    %v313 = vpop.f32.mrf.mxu0
    %v314 = vadd.f32 %v115, %v313
    %v315 = vpop.f32.mrf.mxu0
    %316 = vmatprep.mubr.f32.mxu0 0.0
    %317 = vmatmul.mubr.f32.gmra.mxu0 %v57
    %v318 = vpop.f32.mrf.mxu0
    %v319 = vadd.f32 %v115, %v318
    %v320 = vpop.f32.mrf.mxu0
    %321 = vmatprep.mubr.f32.mxu0 0.0
    %322 = vmatmul.mubr.f32.gmra.mxu0 %v58
    %v323 = vpop.f32.mrf.mxu0
    %v324 = vadd.f32 %v115, %v323
    %v325 = vpop.f32.mrf.mxu0
    %326 = vmatprep.mubr.f32.mxu0 0.0
    %327 = vmatmul.mubr.f32.gmra.mxu0 %v59
    %v328 = vpop.f32.mrf.mxu0
    %v329 = vadd.f32 %v115, %v328
    %v330 = vpop.f32.mrf.mxu0
    %331 = vmatprep.mubr.f32.mxu0 0.0
    %332 = vmatmul.mubr.f32.gmra.mxu0 %v60
    %v333 = vpop.f32.mrf.mxu0
    %v334 = vadd.f32 %v115, %v333
    %v335 = vpop.f32.mrf.mxu0
    %336 = vmatprep.mubr.f32.mxu0 0.0
    %337 = vmatmul.mubr.f32.gmra.mxu0 %v61
    %v338 = vpop.f32.mrf.mxu0
    %v339 = vadd.f32 %v115, %v338
    %v340 = vpop.f32.mrf.mxu0
    %341 = vmatprep.mubr.f32.mxu0 0.0
    %342 = vmatmul.mubr.f32.gmra.mxu0 %v62
    %v343 = vpop.f32.mrf.mxu0
    %v344 = vadd.f32 %v115, %v343
    %v345 = vpop.f32.mrf.mxu0
    %346 = vmatprep.mubr.f32.mxu0 0.0
    %347 = vmatmul.mubr.f32.gmra.mxu0 %v63
    %v348 = vpop.f32.mrf.mxu0
    %v349 = vadd.f32 %v115, %v348
    %v350 = vpop.f32.mrf.mxu0
    %351 = vmatprep.mubr.f32.mxu0 0.0
    %352 = vmatmul.mubr.f32.gmra.mxu0 %v64
    %v353 = vpop.f32.mrf.mxu0
    %v354 = vadd.f32 %v115, %v353
    %v355 = vpop.f32.mrf.mxu0
    %356 = vmatprep.mubr.f32.mxu0 0.0
    %357 = vmatmul.mubr.f32.gmra.mxu0 %v65
    %v358 = vpop.f32.mrf.mxu0
    %v359 = vadd.f32 %v115, %v358
    %v360 = vpop.f32.mrf.mxu0
    %361 = vmatprep.mubr.f32.mxu0 0.0
    %362 = vmatmul.mubr.f32.gmra.mxu0 %v66
    %v363 = vpop.f32.mrf.mxu0
    %v364 = vadd.f32 %v115, %v363
    %v365 = vpop.f32.mrf.mxu0
    %366 = vmatprep.mubr.f32.mxu0 0.0
    %367 = vmatmul.mubr.f32.gmra.mxu0 %v67
    %v368 = vpop.f32.mrf.mxu0
    %v369 = vadd.f32 %v115, %v368
    %v370 = vpop.f32.mrf.mxu0
    %371 = vmatprep.mubr.f32.mxu0 0.0
    %372 = vmatmul.mubr.f32.gmra.mxu0 %v68
    %v373 = vpop.f32.mrf.mxu0
    %v374 = vadd.f32 %v115, %v373
    %v375 = vpop.f32.mrf.mxu0
    %376 = vmatprep.mubr.f32.mxu0 0.0
    %377 = vmatmul.mubr.f32.gmra.mxu0 %v69
    %v378 = vpop.f32.mrf.mxu0
    %v379 = vadd.f32 %v115, %v378
    %v380 = vpop.f32.mrf.mxu0
    %381 = vmatprep.mubr.f32.mxu0 0.0
    %382 = vmatmul.mubr.f32.gmra.mxu0 %v70
    %v383 = vpop.f32.mrf.mxu0
    %v384 = vadd.f32 %v115, %v383
    %v385 = vpop.f32.mrf.mxu0
    %386 = vmatprep.mubr.f32.mxu0 0.0
    %387 = vmatmul.mubr.f32.gmra.mxu0 %v71
    %v388 = vpop.f32.mrf.mxu0
    %v389 = vadd.f32 %v115, %v388
    %v390 = vpop.f32.mrf.mxu0
    %391 = vmatprep.mubr.f32.mxu0 0.0
    %392 = vmatmul.mubr.f32.gmra.mxu0 %v72
    %v393 = vpop.f32.mrf.mxu0
    %v394 = vadd.f32 %v115, %v393
    %v395 = vpop.f32.mrf.mxu0
    %396 = vmatprep.mubr.f32.mxu0 0.0
    %397 = vmatmul.mubr.f32.gmra.mxu0 %v73
    %v398 = vpop.f32.mrf.mxu0
    %v399 = vadd.f32 %v115, %v398
    %v400 = vpop.f32.mrf.mxu0
    %401 = vmatprep.mubr.f32.mxu0 0.0
    %402 = vmatmul.mubr.f32.gmra.mxu0 %v74
    %v403 = vpop.f32.mrf.mxu0
    %v404 = vadd.f32 %v115, %v403
    %v405 = vpop.f32.mrf.mxu0
    %406 = vmatprep.mubr.f32.mxu0 0.0
    %407 = vmatmul.mubr.f32.gmra.mxu0 %v75
    %v408 = vpop.f32.mrf.mxu0
    %v409 = vadd.f32 %v115, %v408
    %v410 = vpop.f32.mrf.mxu0
    %411 = vmatprep.mubr.f32.mxu0 0.0
    %412 = vmatmul.mubr.f32.gmra.mxu0 %v76
    %v413 = vpop.f32.mrf.mxu0
    %v414 = vadd.f32 %v115, %v413
    %v415 = vpop.f32.mrf.mxu0
    %416 = vmatprep.mubr.f32.mxu0 0.0
    %417 = vmatmul.mubr.f32.gmra.mxu0 %v77
    %v418 = vpop.f32.mrf.mxu0
    %v419 = vadd.f32 %v115, %v418
    %v420 = vpop.f32.mrf.mxu0
    %421 = vmatprep.mubr.f32.mxu0 0.0
    %422 = vmatmul.mubr.f32.gmra.mxu0 %v78
    %v423 = vpop.f32.mrf.mxu0
    %v424 = vadd.f32 %v115, %v423
    %v425 = vpop.f32.mrf.mxu0
    %426 = vmatprep.mubr.f32.mxu0 0.0
    %427 = vmatmul.mubr.f32.gmra.mxu0 %v79
    %v428 = vpop.f32.mrf.mxu0
    %v429 = vadd.f32 %v115, %v428
    %v430 = vpop.f32.mrf.mxu0
    %431 = vmatprep.mubr.f32.mxu0 0.0
    %432 = vmatmul.mubr.f32.gmra.mxu0 %v80
    %v433 = vpop.f32.mrf.mxu0
    %v434 = vadd.f32 %v115, %v433
    %v435 = vpop.f32.mrf.mxu0
    %436 = vmatprep.mubr.f32.mxu0 0.0
    %437 = vmatmul.mubr.f32.gmra.mxu0 %v81
    %v438 = vpop.f32.mrf.mxu0
    %v439 = vadd.f32 %v115, %v438
    %v440 = vpop.f32.mrf.mxu0
    %441 = vmatprep.mubr.f32.mxu0 0.0
    %442 = vmatmul.mubr.f32.gmra.mxu0 %v82
    %v443 = vpop.f32.mrf.mxu0
    %v444 = vadd.f32 %v115, %v443
    %v445 = vpop.f32.mrf.mxu0
    %446 = vmatprep.mubr.f32.mxu0 0.0
    %447 = vmatmul.mubr.f32.gmra.mxu0 %v83
    %v448 = vpop.f32.mrf.mxu0
    %v449 = vadd.f32 %v115, %v448
    %v450 = vpop.f32.mrf.mxu0
    %451 = vmatprep.mubr.f32.mxu0 0.0
    %452 = vmatmul.mubr.f32.gmra.mxu0 %v84
    %v453 = vpop.f32.mrf.mxu0
    %v454 = vadd.f32 %v115, %v453
    %v455 = vpop.f32.mrf.mxu0
    %456 = vmatprep.mubr.f32.mxu0 0.0
    %457 = vmatmul.mubr.f32.gmra.mxu0 %v85
    %v458 = vpop.f32.mrf.mxu0
    %v459 = vadd.f32 %v115, %v458
    %v460 = vpop.f32.mrf.mxu0
    %461 = vmatprep.mubr.f32.mxu0 0.0
    %462 = vmatmul.mubr.f32.gmra.mxu0 %v86
    %v463 = vpop.f32.mrf.mxu0
    %v464 = vadd.f32 %v115, %v463
    %v465 = vpop.f32.mrf.mxu0
    %466 = vmatprep.mubr.f32.mxu0 0.0
    %467 = vmatmul.mubr.f32.gmra.mxu0 %v87
    %v468 = vpop.f32.mrf.mxu0
    %v469 = vadd.f32 %v115, %v468
    %v470 = vpop.f32.mrf.mxu0
    %471 = vmatprep.mubr.f32.mxu0 0.0
    %472 = vmatmul.mubr.f32.gmra.mxu0 %v88
    %v473 = vpop.f32.mrf.mxu0
    %v474 = vadd.f32 %v115, %v473
    %v475 = vpop.f32.mrf.mxu0
    %476 = vmatprep.mubr.f32.mxu0 0.0
    %477 = vmatmul.mubr.f32.gmra.mxu0 %v89
    %v478 = vpop.f32.mrf.mxu0
    %v479 = vadd.f32 %v115, %v478
    %v480 = vpop.f32.mrf.mxu0
    %481 = vmatprep.mubr.f32.mxu0 0.0
    %482 = vmatmul.mubr.f32.gmra.mxu0 %v90
    %v483 = vpop.f32.mrf.mxu0
    %v484 = vadd.f32 %v115, %v483
    %v485 = vpop.f32.mrf.mxu0
    %486 = vmatprep.mubr.f32.mxu0 0.0
    %487 = vmatmul.mubr.f32.gmra.mxu0 %v91
    %v488 = vpop.f32.mrf.mxu0
    %v489 = vadd.f32 %v115, %v488
    %v490 = vpop.f32.mrf.mxu0
    %491 = vmatprep.mubr.f32.mxu0 0.0
    %492 = vmatmul.mubr.f32.gmra.mxu0 %v92
    %v493 = vpop.f32.mrf.mxu0
    %v494 = vadd.f32 %v115, %v493
    %v495 = vpop.f32.mrf.mxu0
    %496 = vmatprep.mubr.f32.mxu0 0.0
    %497 = vmatmul.mubr.f32.gmra.mxu0 %v93
    %v498 = vpop.f32.mrf.mxu0
    %v499 = vadd.f32 %v115, %v498
    %v500 = vpop.f32.mrf.mxu0
    %501 = vdwg.mxu0
    %v502 = vmul.f32 %v184, 0.5
    %v503 = vmul.f32 %v189, 0.5
    %v504 = vmul.f32 %v194, 0.5
    %v505 = vmul.f32 %v199, 0.5
    %v506 = vmul.f32 %v204, 0.5
    %v507 = vmul.f32 %v209, 0.5
    %v508 = vmul.f32 %v214, 0.5
    %v509 = vmul.f32 %v219, 0.5
    %v510 = vmul.f32 %v224, 0.5
    %v511 = vmul.f32 %v229, 0.5
    %v512 = vmul.f32 %v234, 0.5
    %v513 = vmul.f32 %v239, 0.5
    %v514 = vmul.f32 %v244, 0.5
    %v515 = vmul.f32 %v249, 0.5
    %v516 = vmul.f32 %v254, 0.5
    %v517 = vmul.f32 %v259, 0.5
    %v518 = vmul.f32 %v264, 0.5
    %v519 = vmul.f32 %v269, 0.5
    %v520 = vmul.f32 %v274, 0.5
    %v521 = vmul.f32 %v279, 0.5
    %v522 = vmul.f32 %v284, 0.5
    %v523 = vmul.f32 %v289, 0.5
    %v524 = vmul.f32 %v294, 0.5
    %v525 = vmul.f32 %v299, 0.5
    %v526 = vmul.f32 %v304, 0.5
    %v527 = vmul.f32 %v309, 0.5
    %v528 = vmul.f32 %v314, 0.5
    %v529 = vmul.f32 %v319, 0.5
    %v530 = vmul.f32 %v324, 0.5
    %v531 = vmul.f32 %v329, 0.5
    %v532 = vmul.f32 %v334, 0.5
    %v533 = vmul.f32 %v339, 0.5
    %v534 = vmul.f32 %v344, 0.5
    %v535 = vmul.f32 %v349, 0.5
    %v536 = vmul.f32 %v354, 0.5
    %v537 = vmul.f32 %v359, 0.5
    %v538 = vmul.f32 %v364, 0.5
    %v539 = vmul.f32 %v369, 0.5
    %v540 = vmul.f32 %v374, 0.5
    %v541 = vmul.f32 %v379, 0.5
    %v542 = vmul.f32 %v384, 0.5
    %v543 = vmul.f32 %v389, 0.5
    %v544 = vmul.f32 %v394, 0.5
    %v545 = vmul.f32 %v399, 0.5
    %v546 = vmul.f32 %v404, 0.5
    %v547 = vmul.f32 %v409, 0.5
    %v548 = vmul.f32 %v414, 0.5
    %v549 = vmul.f32 %v419, 0.5
    %v550 = vmul.f32 %v424, 0.5
    %v551 = vmul.f32 %v429, 0.5
    %v552 = vmul.f32 %v434, 0.5
    %v553 = vmul.f32 %v439, 0.5
    %v554 = vmul.f32 %v444, 0.5
    %v555 = vmul.f32 %v449, 0.5
    %v556 = vmul.f32 %v454, 0.5
    %v557 = vmul.f32 %v459, 0.5
    %v558 = vmul.f32 %v464, 0.5
    %v559 = vmul.f32 %v469, 0.5
    %v560 = vmul.f32 %v474, 0.5
    %v561 = vmul.f32 %v479, 0.5
    %v562 = vmul.f32 %v484, 0.5
    %v563 = vmul.f32 %v489, 0.5
    %v564 = vmul.f32 %v494, 0.5
    %v565 = vmul.f32 %v499, 0.5
    %v566 = vtanh.pop %v502
    %v567 = vtanh.pop %v503
    %v568 = vtanh.pop %v504
    %v569 = vtanh.pop %v505
    %v570 = vtanh.pop %v506
    %v571 = vtanh.pop %v507
    %v572 = vtanh.pop %v508
    %v573 = vtanh.pop %v509
    %v574 = vtanh.pop %v510
    %v575 = vtanh.pop %v511
    %v576 = vtanh.pop %v512
    %v577 = vtanh.pop %v513
    %v578 = vtanh.pop %v514
    %v579 = vtanh.pop %v515
    %v580 = vtanh.pop %v516
    %v581 = vtanh.pop %v517
    %v582 = vtanh.pop %v518
    %v583 = vtanh.pop %v519
    %v584 = vtanh.pop %v520
    %v585 = vtanh.pop %v521
    %v586 = vtanh.pop %v522
    %v587 = vtanh.pop %v523
    %v588 = vtanh.pop %v524
    %v589 = vtanh.pop %v525
    %v590 = vtanh.pop %v526
    %v591 = vtanh.pop %v527
    %v592 = vtanh.pop %v528
    %v593 = vtanh.pop %v529
    %v594 = vtanh.pop %v530
    %v595 = vtanh.pop %v531
    %v596 = vtanh.pop %v532
    %v597 = vtanh.pop %v533
    %v598 = vtanh.pop %v534
    %v599 = vtanh.pop %v535
    %v600 = vtanh.pop %v536
    %v601 = vtanh.pop %v537
    %v602 = vtanh.pop %v538
    %v603 = vtanh.pop %v539
    %v604 = vtanh.pop %v540
    %v605 = vtanh.pop %v541
    %v606 = vtanh.pop %v542
    %v607 = vtanh.pop %v543
    %v608 = vtanh.pop %v544
    %v609 = vtanh.pop %v545
    %v610 = vtanh.pop %v546
    %v611 = vtanh.pop %v547
    %v612 = vtanh.pop %v548
    %v613 = vtanh.pop %v549
    %v614 = vtanh.pop %v550
    %v615 = vtanh.pop %v551
    %v616 = vtanh.pop %v552
    %v617 = vtanh.pop %v553
    %v618 = vtanh.pop %v554
    %v619 = vtanh.pop %v555
    %v620 = vtanh.pop %v556
    %v621 = vtanh.pop %v557
    %v622 = vtanh.pop %v558
    %v623 = vtanh.pop %v559
    %v624 = vtanh.pop %v560
    %v625 = vtanh.pop %v561
    %v626 = vtanh.pop %v562
    %v627 = vtanh.pop %v563
    %v628 = vtanh.pop %v564
    %v629 = vtanh.pop %v565
    %v630 = vmul.f32 %v566, 0.5
    %v631 = vmul.f32 %v567, 0.5
    %v632 = vmul.f32 %v568, 0.5
    %v633 = vmul.f32 %v569, 0.5
    %v634 = vmul.f32 %v570, 0.5
    %v635 = vmul.f32 %v571, 0.5
    %v636 = vmul.f32 %v572, 0.5
    %v637 = vmul.f32 %v573, 0.5
    %v638 = vmul.f32 %v574, 0.5
    %v639 = vmul.f32 %v575, 0.5
    %v640 = vmul.f32 %v576, 0.5
    %v641 = vmul.f32 %v577, 0.5
    %v642 = vmul.f32 %v578, 0.5
    %v643 = vmul.f32 %v579, 0.5
    %v644 = vmul.f32 %v580, 0.5
    %v645 = vmul.f32 %v581, 0.5
    %v646 = vmul.f32 %v582, 0.5
    %v647 = vmul.f32 %v583, 0.5
    %v648 = vmul.f32 %v584, 0.5
    %v649 = vmul.f32 %v585, 0.5
    %v650 = vmul.f32 %v586, 0.5
    %v651 = vmul.f32 %v587, 0.5
    %v652 = vmul.f32 %v588, 0.5
    %v653 = vmul.f32 %v589, 0.5
    %v654 = vmul.f32 %v590, 0.5
    %v655 = vmul.f32 %v591, 0.5
    %v656 = vmul.f32 %v592, 0.5
    %v657 = vmul.f32 %v593, 0.5
    %v658 = vmul.f32 %v594, 0.5
    %v659 = vmul.f32 %v595, 0.5
    %v660 = vmul.f32 %v596, 0.5
    %v661 = vmul.f32 %v597, 0.5
    %v662 = vmul.f32 %v598, 0.5
    %v663 = vmul.f32 %v599, 0.5
    %v664 = vmul.f32 %v600, 0.5
    %v665 = vmul.f32 %v601, 0.5
    %v666 = vmul.f32 %v602, 0.5
    %v667 = vmul.f32 %v603, 0.5
    %v668 = vmul.f32 %v604, 0.5
    %v669 = vmul.f32 %v605, 0.5
    %v670 = vmul.f32 %v606, 0.5
    %v671 = vmul.f32 %v607, 0.5
    %v672 = vmul.f32 %v608, 0.5
    %v673 = vmul.f32 %v609, 0.5
    %v674 = vmul.f32 %v610, 0.5
    %v675 = vmul.f32 %v611, 0.5
    %v676 = vmul.f32 %v612, 0.5
    %v677 = vmul.f32 %v613, 0.5
    %v678 = vmul.f32 %v614, 0.5
    %v679 = vmul.f32 %v615, 0.5
    %v680 = vmul.f32 %v616, 0.5
    %v681 = vmul.f32 %v617, 0.5
    %v682 = vmul.f32 %v618, 0.5
    %v683 = vmul.f32 %v619, 0.5
    %v684 = vmul.f32 %v620, 0.5
    %v685 = vmul.f32 %v621, 0.5
    %v686 = vmul.f32 %v622, 0.5
    %v687 = vmul.f32 %v623, 0.5
    %v688 = vmul.f32 %v624, 0.5
    %v689 = vmul.f32 %v625, 0.5
    %v690 = vmul.f32 %v626, 0.5
    %v691 = vmul.f32 %v627, 0.5
    %v692 = vmul.f32 %v628, 0.5
    %v693 = vmul.f32 %v629, 0.5
    %v694 = vadd.f32 %v630, 0.5
    %v695 = vadd.f32 %v631, 0.5
    %v696 = vadd.f32 %v632, 0.5
    %v697 = vadd.f32 %v633, 0.5
    %v698 = vadd.f32 %v634, 0.5
    %v699 = vadd.f32 %v635, 0.5
    %v700 = vadd.f32 %v636, 0.5
    %v701 = vadd.f32 %v637, 0.5
    %v702 = vadd.f32 %v638, 0.5
    %v703 = vadd.f32 %v639, 0.5
    %v704 = vadd.f32 %v640, 0.5
    %v705 = vadd.f32 %v641, 0.5
    %v706 = vadd.f32 %v642, 0.5
    %v707 = vadd.f32 %v643, 0.5
    %v708 = vadd.f32 %v644, 0.5
    %v709 = vadd.f32 %v645, 0.5
    %v710 = vadd.f32 %v646, 0.5
    %v711 = vadd.f32 %v647, 0.5
    %v712 = vadd.f32 %v648, 0.5
    %v713 = vadd.f32 %v649, 0.5
    %v714 = vadd.f32 %v650, 0.5
    %v715 = vadd.f32 %v651, 0.5
    %v716 = vadd.f32 %v652, 0.5
    %v717 = vadd.f32 %v653, 0.5
    %v718 = vadd.f32 %v654, 0.5
    %v719 = vadd.f32 %v655, 0.5
    %v720 = vadd.f32 %v656, 0.5
    %v721 = vadd.f32 %v657, 0.5
    %v722 = vadd.f32 %v658, 0.5
    %v723 = vadd.f32 %v659, 0.5
    %v724 = vadd.f32 %v660, 0.5
    %v725 = vadd.f32 %v661, 0.5
    %v726 = vadd.f32 %v662, 0.5
    %v727 = vadd.f32 %v663, 0.5
    %v728 = vadd.f32 %v664, 0.5
    %v729 = vadd.f32 %v665, 0.5
    %v730 = vadd.f32 %v666, 0.5
    %v731 = vadd.f32 %v667, 0.5
    %v732 = vadd.f32 %v668, 0.5
    %v733 = vadd.f32 %v669, 0.5
    %v734 = vadd.f32 %v670, 0.5
    %v735 = vadd.f32 %v671, 0.5
    %v736 = vadd.f32 %v672, 0.5
    %v737 = vadd.f32 %v673, 0.5
    %v738 = vadd.f32 %v674, 0.5
    %v739 = vadd.f32 %v675, 0.5
    %v740 = vadd.f32 %v676, 0.5
    %v741 = vadd.f32 %v677, 0.5
    %v742 = vadd.f32 %v678, 0.5
    %v743 = vadd.f32 %v679, 0.5
    %v744 = vadd.f32 %v680, 0.5
    %v745 = vadd.f32 %v681, 0.5
    %v746 = vadd.f32 %v682, 0.5
    %v747 = vadd.f32 %v683, 0.5
    %v748 = vadd.f32 %v684, 0.5
    %v749 = vadd.f32 %v685, 0.5
    %v750 = vadd.f32 %v686, 0.5
    %v751 = vadd.f32 %v687, 0.5
    %v752 = vadd.f32 %v688, 0.5
    %v753 = vadd.f32 %v689, 0.5
    %v754 = vadd.f32 %v690, 0.5
    %v755 = vadd.f32 %v691, 0.5
    %v756 = vadd.f32 %v692, 0.5
    %v757 = vadd.f32 %v693, 0.5
    %v758 = vtanh.pop %v184
    %v759 = vtanh.pop %v189
    %v760 = vtanh.pop %v194
    %v761 = vtanh.pop %v199
    %v762 = vtanh.pop %v204
    %v763 = vtanh.pop %v209
    %v764 = vtanh.pop %v214
    %v765 = vtanh.pop %v219
    %v766 = vtanh.pop %v224
    %v767 = vtanh.pop %v229
    %v768 = vtanh.pop %v234
    %v769 = vtanh.pop %v239
    %v770 = vtanh.pop %v244
    %v771 = vtanh.pop %v249
    %v772 = vtanh.pop %v254
    %v773 = vtanh.pop %v259
    %v774 = vtanh.pop %v264
    %v775 = vtanh.pop %v269
    %v776 = vtanh.pop %v274
    %v777 = vtanh.pop %v279
    %v778 = vtanh.pop %v284
    %v779 = vtanh.pop %v289
    %v780 = vtanh.pop %v294
    %v781 = vtanh.pop %v299
    %v782 = vtanh.pop %v304
    %v783 = vtanh.pop %v309
    %v784 = vtanh.pop %v314
    %v785 = vtanh.pop %v319
    %v786 = vtanh.pop %v324
    %v787 = vtanh.pop %v329
    %v788 = vtanh.pop %v334
    %v789 = vtanh.pop %v339
    %v790 = vtanh.pop %v344
    %v791 = vtanh.pop %v349
    %v792 = vtanh.pop %v354
    %v793 = vtanh.pop %v359
    %v794 = vtanh.pop %v364
    %v795 = vtanh.pop %v369
    %v796 = vtanh.pop %v374
    %v797 = vtanh.pop %v379
    %v798 = vtanh.pop %v384
    %v799 = vtanh.pop %v389
    %v800 = vtanh.pop %v394
    %v801 = vtanh.pop %v399
    %v802 = vtanh.pop %v404
    %v803 = vtanh.pop %v409
    %v804 = vtanh.pop %v414
    %v805 = vtanh.pop %v419
    %v806 = vtanh.pop %v424
    %v807 = vtanh.pop %v429
    %v808 = vtanh.pop %v434
    %v809 = vtanh.pop %v439
    %v810 = vtanh.pop %v444
    %v811 = vtanh.pop %v449
    %v812 = vtanh.pop %v454
    %v813 = vtanh.pop %v459
    %v814 = vtanh.pop %v464
    %v815 = vtanh.pop %v469
    %v816 = vtanh.pop %v474
    %v817 = vtanh.pop %v479
    %v818 = vtanh.pop %v484
    %v819 = vtanh.pop %v489
    %v820 = vtanh.pop %v494
    %v821 = vtanh.pop %v499
    %v822 = vld [vmem:[%s1] sm:$0xff]
    %v823 = vld [vmem:[%s1 + $0x8] sm:$0xff]
    %v824 = vld [vmem:[%s1 + $0x10] sm:$0xff]
    %v825 = vld [vmem:[%s1 + $0x18] sm:$0xff]
    %v826 = vld [vmem:[%s1 + $0x20] sm:$0xff]
    %v827 = vld [vmem:[%s1 + $0x28] sm:$0xff]
    %v828 = vld [vmem:[%s1 + $0x30] sm:$0xff]
    %v829 = vld [vmem:[%s1 + $0x38] sm:$0xff]
    %v830 = vld [vmem:[%s1 + $0x40] sm:$0xff]
    %v831 = vld [vmem:[%s1 + $0x48] sm:$0xff]
    %v832 = vld [vmem:[%s1 + $0x50] sm:$0xff]
    %v833 = vld [vmem:[%s1 + $0x58] sm:$0xff]
    %v834 = vld [vmem:[%s1 + $0x60] sm:$0xff]
    %v835 = vld [vmem:[%s1 + $0x68] sm:$0xff]
    %v836 = vld [vmem:[%s1 + $0x70] sm:$0xff]
    %v837 = vld [vmem:[%s1 + $0x78] sm:$0xff]
    %v838 = vld [vmem:[%s1 + $0x80] sm:$0xff]
    %v839 = vld [vmem:[%s1 + $0x88] sm:$0xff]
    %v840 = vld [vmem:[%s1 + $0x90] sm:$0xff]
    %v841 = vld [vmem:[%s1 + $0x98] sm:$0xff]
    %v842 = vld [vmem:[%s1 + $0xa0] sm:$0xff]
    %v843 = vld [vmem:[%s1 + $0xa8] sm:$0xff]
    %v844 = vld [vmem:[%s1 + $0xb0] sm:$0xff]
    %v845 = vld [vmem:[%s1 + $0xb8] sm:$0xff]
    %v846 = vld [vmem:[%s1 + $0xc0] sm:$0xff]
    %v847 = vld [vmem:[%s1 + $0xc8] sm:$0xff]
    %v848 = vld [vmem:[%s1 + $0xd0] sm:$0xff]
    %v849 = vld [vmem:[%s1 + $0xd8] sm:$0xff]
    %v850 = vld [vmem:[%s1 + $0xe0] sm:$0xff]
    %v851 = vld [vmem:[%s1 + $0xe8] sm:$0xff]
    %v852 = vld [vmem:[%s1 + $0xf0] sm:$0xff]
    %v853 = vld [vmem:[%s1 + $0xf8] sm:$0xff]
    %v854 = vld [vmem:[%s1 + $0x100] sm:$0xff]
    %v855 = vld [vmem:[%s1 + $0x108] sm:$0xff]
    %v856 = vld [vmem:[%s1 + $0x110] sm:$0xff]
    %v857 = vld [vmem:[%s1 + $0x118] sm:$0xff]
    %v858 = vld [vmem:[%s1 + $0x120] sm:$0xff]
    %v859 = vld [vmem:[%s1 + $0x128] sm:$0xff]
    %v860 = vld [vmem:[%s1 + $0x130] sm:$0xff]
    %v861 = vld [vmem:[%s1 + $0x138] sm:$0xff]
    %v862 = vld [vmem:[%s1 + $0x140] sm:$0xff]
    %v863 = vld [vmem:[%s1 + $0x148] sm:$0xff]
    %v864 = vld [vmem:[%s1 + $0x150] sm:$0xff]
    %v865 = vld [vmem:[%s1 + $0x158] sm:$0xff]
    %v866 = vld [vmem:[%s1 + $0x160] sm:$0xff]
    %v867 = vld [vmem:[%s1 + $0x168] sm:$0xff]
    %v868 = vld [vmem:[%s1 + $0x170] sm:$0xff]
    %v869 = vld [vmem:[%s1 + $0x178] sm:$0xff]
    %v870 = vld [vmem:[%s1 + $0x180] sm:$0xff]
    %v871 = vld [vmem:[%s1 + $0x188] sm:$0xff]
    %v872 = vld [vmem:[%s1 + $0x190] sm:$0xff]
    %v873 = vld [vmem:[%s1 + $0x198] sm:$0xff]
    %v874 = vld [vmem:[%s1 + $0x1a0] sm:$0xff]
    %v875 = vld [vmem:[%s1 + $0x1a8] sm:$0xff]
    %v876 = vld [vmem:[%s1 + $0x1b0] sm:$0xff]
    %v877 = vld [vmem:[%s1 + $0x1b8] sm:$0xff]
    %v878 = vld [vmem:[%s1 + $0x1c0] sm:$0xff]
    %v879 = vld [vmem:[%s1 + $0x1c8] sm:$0xff]
    %v880 = vld [vmem:[%s1 + $0x1d0] sm:$0xff]
    %v881 = vld [vmem:[%s1 + $0x1d8] sm:$0xff]
    %v882 = vld [vmem:[%s1 + $0x1e0] sm:$0xff]
    %v883 = vld [vmem:[%s1 + $0x1e8] sm:$0xff]
    %v884 = vld [vmem:[%s1 + $0x1f0] sm:$0xff]
    %v885 = vld [vmem:[%s1 + $0x1f8] sm:$0xff]
    %950 = vrot.lane.b32.xlu0 %v822, 32
    %v951 = vpop.permute.xlu0 %950
    %952 = vrot.lane.b32.xlu0 %v823, 32
    %v953 = vpop.permute.xlu0 %952
    %954 = vrot.lane.b32.xlu0 %v824, 32
    %v955 = vpop.permute.xlu0 %954
    %956 = vrot.lane.b32.xlu0 %v825, 32
    %v957 = vpop.permute.xlu0 %956
    %958 = vrot.lane.b32.xlu0 %v826, 32
    %v959 = vpop.permute.xlu0 %958
    %960 = vrot.lane.b32.xlu0 %v827, 32
    %v961 = vpop.permute.xlu0 %960
    %962 = vrot.lane.b32.xlu0 %v828, 32
    %v963 = vpop.permute.xlu0 %962
    %964 = vrot.lane.b32.xlu0 %v829, 32
    %v965 = vpop.permute.xlu0 %964
    %966 = vrot.lane.b32.xlu0 %v830, 32
    %v967 = vpop.permute.xlu0 %966
    %968 = vrot.lane.b32.xlu0 %v831, 32
    %v969 = vpop.permute.xlu0 %968
    %970 = vrot.lane.b32.xlu0 %v832, 32
    %v971 = vpop.permute.xlu0 %970
    %972 = vrot.lane.b32.xlu0 %v833, 32
    %v973 = vpop.permute.xlu0 %972
    %974 = vrot.lane.b32.xlu0 %v834, 32
    %v975 = vpop.permute.xlu0 %974
    %976 = vrot.lane.b32.xlu0 %v835, 32
    %v977 = vpop.permute.xlu0 %976
    %978 = vrot.lane.b32.xlu0 %v836, 32
    %v979 = vpop.permute.xlu0 %978
    %980 = vrot.lane.b32.xlu0 %v837, 32
    %v981 = vpop.permute.xlu0 %980
    %982 = vrot.lane.b32.xlu0 %v838, 32
    %v983 = vpop.permute.xlu0 %982
    %984 = vrot.lane.b32.xlu0 %v839, 32
    %v985 = vpop.permute.xlu0 %984
    %986 = vrot.lane.b32.xlu0 %v840, 32
    %v987 = vpop.permute.xlu0 %986
    %988 = vrot.lane.b32.xlu0 %v841, 32
    %v989 = vpop.permute.xlu0 %988
    %990 = vrot.lane.b32.xlu0 %v842, 32
    %v991 = vpop.permute.xlu0 %990
    %992 = vrot.lane.b32.xlu0 %v843, 32
    %v993 = vpop.permute.xlu0 %992
    %994 = vrot.lane.b32.xlu0 %v844, 32
    %v995 = vpop.permute.xlu0 %994
    %996 = vrot.lane.b32.xlu0 %v845, 32
    %v997 = vpop.permute.xlu0 %996
    %998 = vrot.lane.b32.xlu0 %v846, 32
    %v999 = vpop.permute.xlu0 %998
    %1000 = vrot.lane.b32.xlu0 %v847, 32
    %v1001 = vpop.permute.xlu0 %1000
    %1002 = vrot.lane.b32.xlu0 %v848, 32
    %v1003 = vpop.permute.xlu0 %1002
    %1004 = vrot.lane.b32.xlu0 %v849, 32
    %v1005 = vpop.permute.xlu0 %1004
    %1006 = vrot.lane.b32.xlu0 %v850, 32
    %v1007 = vpop.permute.xlu0 %1006
    %1008 = vrot.lane.b32.xlu0 %v851, 32
    %v1009 = vpop.permute.xlu0 %1008
    %1010 = vrot.lane.b32.xlu0 %v852, 32
    %v1011 = vpop.permute.xlu0 %1010
    %1012 = vrot.lane.b32.xlu0 %v853, 32
    %v1013 = vpop.permute.xlu0 %1012
    %1014 = vrot.lane.b32.xlu0 %v854, 32
    %v1015 = vpop.permute.xlu0 %1014
    %1016 = vrot.lane.b32.xlu0 %v855, 32
    %v1017 = vpop.permute.xlu0 %1016
    %1018 = vrot.lane.b32.xlu0 %v856, 32
    %v1019 = vpop.permute.xlu0 %1018
    %1020 = vrot.lane.b32.xlu0 %v857, 32
    %v1021 = vpop.permute.xlu0 %1020
    %1022 = vrot.lane.b32.xlu0 %v858, 32
    %v1023 = vpop.permute.xlu0 %1022
    %1024 = vrot.lane.b32.xlu0 %v859, 32
    %v1025 = vpop.permute.xlu0 %1024
    %1026 = vrot.lane.b32.xlu0 %v860, 32
    %v1027 = vpop.permute.xlu0 %1026
    %1028 = vrot.lane.b32.xlu0 %v861, 32
    %v1029 = vpop.permute.xlu0 %1028
    %1030 = vrot.lane.b32.xlu0 %v862, 32
    %v1031 = vpop.permute.xlu0 %1030
    %1032 = vrot.lane.b32.xlu0 %v863, 32
    %v1033 = vpop.permute.xlu0 %1032
    %1034 = vrot.lane.b32.xlu0 %v864, 32
    %v1035 = vpop.permute.xlu0 %1034
    %1036 = vrot.lane.b32.xlu0 %v865, 32
    %v1037 = vpop.permute.xlu0 %1036
    %1038 = vrot.lane.b32.xlu0 %v866, 32
    %v1039 = vpop.permute.xlu0 %1038
    %1040 = vrot.lane.b32.xlu0 %v867, 32
    %v1041 = vpop.permute.xlu0 %1040
    %1042 = vrot.lane.b32.xlu0 %v868, 32
    %v1043 = vpop.permute.xlu0 %1042
    %1044 = vrot.lane.b32.xlu0 %v869, 32
    %v1045 = vpop.permute.xlu0 %1044
    %1046 = vrot.lane.b32.xlu0 %v870, 32
    %v1047 = vpop.permute.xlu0 %1046
    %1048 = vrot.lane.b32.xlu0 %v871, 32
    %v1049 = vpop.permute.xlu0 %1048
    %1050 = vrot.lane.b32.xlu0 %v872, 32
    %v1051 = vpop.permute.xlu0 %1050
    %1052 = vrot.lane.b32.xlu0 %v873, 32
    %v1053 = vpop.permute.xlu0 %1052
    %1054 = vrot.lane.b32.xlu0 %v874, 32
    %v1055 = vpop.permute.xlu0 %1054
    %1056 = vrot.lane.b32.xlu0 %v875, 32
    %v1057 = vpop.permute.xlu0 %1056
    %1058 = vrot.lane.b32.xlu0 %v876, 32
    %v1059 = vpop.permute.xlu0 %1058
    %1060 = vrot.lane.b32.xlu0 %v877, 32
    %v1061 = vpop.permute.xlu0 %1060
    %1062 = vrot.lane.b32.xlu0 %v878, 32
    %v1063 = vpop.permute.xlu0 %1062
    %1064 = vrot.lane.b32.xlu0 %v879, 32
    %v1065 = vpop.permute.xlu0 %1064
    %1066 = vrot.lane.b32.xlu0 %v880, 32
    %v1067 = vpop.permute.xlu0 %1066
    %1068 = vrot.lane.b32.xlu0 %v881, 32
    %v1069 = vpop.permute.xlu0 %1068
    %1070 = vrot.lane.b32.xlu0 %v882, 32
    %v1071 = vpop.permute.xlu0 %1070
    %1072 = vrot.lane.b32.xlu0 %v883, 32
    %v1073 = vpop.permute.xlu0 %1072
    %1074 = vrot.lane.b32.xlu0 %v884, 32
    %v1075 = vpop.permute.xlu0 %1074
    %1076 = vrot.lane.b32.xlu0 %v885, 32
    %v1077 = vpop.permute.xlu0 %1076
    %v1142 = vmul.f32 %v694, %v951
    %v1143 = vmul.f32 %v695, %v953
    %v1144 = vmul.f32 %v696, %v955
    %v1145 = vmul.f32 %v697, %v957
    %v1146 = vmul.f32 %v698, %v959
    %v1147 = vmul.f32 %v699, %v961
    %v1148 = vmul.f32 %v700, %v963
    %v1149 = vmul.f32 %v701, %v965
    %v1150 = vmul.f32 %v702, %v967
    %v1151 = vmul.f32 %v703, %v969
    %v1152 = vmul.f32 %v704, %v971
    %v1153 = vmul.f32 %v705, %v973
    %v1154 = vmul.f32 %v706, %v975
    %v1155 = vmul.f32 %v707, %v977
    %v1156 = vmul.f32 %v708, %v979
    %v1157 = vmul.f32 %v709, %v981
    %v1158 = vmul.f32 %v710, %v983
    %v1159 = vmul.f32 %v711, %v985
    %v1160 = vmul.f32 %v712, %v987
    %v1161 = vmul.f32 %v713, %v989
    %v1162 = vmul.f32 %v714, %v991
    %v1163 = vmul.f32 %v715, %v993
    %v1164 = vmul.f32 %v716, %v995
    %v1165 = vmul.f32 %v717, %v997
    %v1166 = vmul.f32 %v718, %v999
    %v1167 = vmul.f32 %v719, %v1001
    %v1168 = vmul.f32 %v720, %v1003
    %v1169 = vmul.f32 %v721, %v1005
    %v1170 = vmul.f32 %v722, %v1007
    %v1171 = vmul.f32 %v723, %v1009
    %v1172 = vmul.f32 %v724, %v1011
    %v1173 = vmul.f32 %v725, %v1013
    %v1174 = vmul.f32 %v726, %v1015
    %v1175 = vmul.f32 %v727, %v1017
    %v1176 = vmul.f32 %v728, %v1019
    %v1177 = vmul.f32 %v729, %v1021
    %v1178 = vmul.f32 %v730, %v1023
    %v1179 = vmul.f32 %v731, %v1025
    %v1180 = vmul.f32 %v732, %v1027
    %v1181 = vmul.f32 %v733, %v1029
    %v1182 = vmul.f32 %v734, %v1031
    %v1183 = vmul.f32 %v735, %v1033
    %v1184 = vmul.f32 %v736, %v1035
    %v1185 = vmul.f32 %v737, %v1037
    %v1186 = vmul.f32 %v738, %v1039
    %v1187 = vmul.f32 %v739, %v1041
    %v1188 = vmul.f32 %v740, %v1043
    %v1189 = vmul.f32 %v741, %v1045
    %v1190 = vmul.f32 %v742, %v1047
    %v1191 = vmul.f32 %v743, %v1049
    %v1192 = vmul.f32 %v744, %v1051
    %v1193 = vmul.f32 %v745, %v1053
    %v1194 = vmul.f32 %v746, %v1055
    %v1195 = vmul.f32 %v747, %v1057
    %v1196 = vmul.f32 %v748, %v1059
    %v1197 = vmul.f32 %v749, %v1061
    %v1198 = vmul.f32 %v750, %v1063
    %v1199 = vmul.f32 %v751, %v1065
    %v1200 = vmul.f32 %v752, %v1067
    %v1201 = vmul.f32 %v753, %v1069
    %v1202 = vmul.f32 %v754, %v1071
    %v1203 = vmul.f32 %v755, %v1073
    %v1204 = vmul.f32 %v756, %v1075
    %v1205 = vmul.f32 %v757, %v1077
    %1270 = vrot.lane.b32.xlu0 %v758, 32
    %v1271 = vpop.permute.xlu0 %1270
    %1272 = vrot.lane.b32.xlu0 %v759, 32
    %v1273 = vpop.permute.xlu0 %1272
    %1274 = vrot.lane.b32.xlu0 %v760, 32
    %v1275 = vpop.permute.xlu0 %1274
    %1276 = vrot.lane.b32.xlu0 %v761, 32
    %v1277 = vpop.permute.xlu0 %1276
    %1278 = vrot.lane.b32.xlu0 %v762, 32
    %v1279 = vpop.permute.xlu0 %1278
    %1280 = vrot.lane.b32.xlu0 %v763, 32
    %v1281 = vpop.permute.xlu0 %1280
    %1282 = vrot.lane.b32.xlu0 %v764, 32
    %v1283 = vpop.permute.xlu0 %1282
    %1284 = vrot.lane.b32.xlu0 %v765, 32
    %v1285 = vpop.permute.xlu0 %1284
    %1286 = vrot.lane.b32.xlu0 %v766, 32
    %v1287 = vpop.permute.xlu0 %1286
    %1288 = vrot.lane.b32.xlu0 %v767, 32
    %v1289 = vpop.permute.xlu0 %1288
    %1290 = vrot.lane.b32.xlu0 %v768, 32
    %v1291 = vpop.permute.xlu0 %1290
    %1292 = vrot.lane.b32.xlu0 %v769, 32
    %v1293 = vpop.permute.xlu0 %1292
    %1294 = vrot.lane.b32.xlu0 %v770, 32
    %v1295 = vpop.permute.xlu0 %1294
    %1296 = vrot.lane.b32.xlu0 %v771, 32
    %v1297 = vpop.permute.xlu0 %1296
    %1298 = vrot.lane.b32.xlu0 %v772, 32
    %v1299 = vpop.permute.xlu0 %1298
    %1300 = vrot.lane.b32.xlu0 %v773, 32
    %v1301 = vpop.permute.xlu0 %1300
    %1302 = vrot.lane.b32.xlu0 %v774, 32
    %v1303 = vpop.permute.xlu0 %1302
    %1304 = vrot.lane.b32.xlu0 %v775, 32
    %v1305 = vpop.permute.xlu0 %1304
    %1306 = vrot.lane.b32.xlu0 %v776, 32
    %v1307 = vpop.permute.xlu0 %1306
    %1308 = vrot.lane.b32.xlu0 %v777, 32
    %v1309 = vpop.permute.xlu0 %1308
    %1310 = vrot.lane.b32.xlu0 %v778, 32
    %v1311 = vpop.permute.xlu0 %1310
    %1312 = vrot.lane.b32.xlu0 %v779, 32
    %v1313 = vpop.permute.xlu0 %1312
    %1314 = vrot.lane.b32.xlu0 %v780, 32
    %v1315 = vpop.permute.xlu0 %1314
    %1316 = vrot.lane.b32.xlu0 %v781, 32
    %v1317 = vpop.permute.xlu0 %1316
    %1318 = vrot.lane.b32.xlu0 %v782, 32
    %v1319 = vpop.permute.xlu0 %1318
    %1320 = vrot.lane.b32.xlu0 %v783, 32
    %v1321 = vpop.permute.xlu0 %1320
    %1322 = vrot.lane.b32.xlu0 %v784, 32
    %v1323 = vpop.permute.xlu0 %1322
    %1324 = vrot.lane.b32.xlu0 %v785, 32
    %v1325 = vpop.permute.xlu0 %1324
    %1326 = vrot.lane.b32.xlu0 %v786, 32
    %v1327 = vpop.permute.xlu0 %1326
    %1328 = vrot.lane.b32.xlu0 %v787, 32
    %v1329 = vpop.permute.xlu0 %1328
    %1330 = vrot.lane.b32.xlu0 %v788, 32
    %v1331 = vpop.permute.xlu0 %1330
    %1332 = vrot.lane.b32.xlu0 %v789, 32
    %v1333 = vpop.permute.xlu0 %1332
    %1334 = vrot.lane.b32.xlu0 %v790, 32
    %v1335 = vpop.permute.xlu0 %1334
    %1336 = vrot.lane.b32.xlu0 %v791, 32
    %v1337 = vpop.permute.xlu0 %1336
    %1338 = vrot.lane.b32.xlu0 %v792, 32
    %v1339 = vpop.permute.xlu0 %1338
    %1340 = vrot.lane.b32.xlu0 %v793, 32
    %v1341 = vpop.permute.xlu0 %1340
    %1342 = vrot.lane.b32.xlu0 %v794, 32
    %v1343 = vpop.permute.xlu0 %1342
    %1344 = vrot.lane.b32.xlu0 %v795, 32
    %v1345 = vpop.permute.xlu0 %1344
    %1346 = vrot.lane.b32.xlu0 %v796, 32
    %v1347 = vpop.permute.xlu0 %1346
    %1348 = vrot.lane.b32.xlu0 %v797, 32
    %v1349 = vpop.permute.xlu0 %1348
    %1350 = vrot.lane.b32.xlu0 %v798, 32
    %v1351 = vpop.permute.xlu0 %1350
    %1352 = vrot.lane.b32.xlu0 %v799, 32
    %v1353 = vpop.permute.xlu0 %1352
    %1354 = vrot.lane.b32.xlu0 %v800, 32
    %v1355 = vpop.permute.xlu0 %1354
    %1356 = vrot.lane.b32.xlu0 %v801, 32
    %v1357 = vpop.permute.xlu0 %1356
    %1358 = vrot.lane.b32.xlu0 %v802, 32
    %v1359 = vpop.permute.xlu0 %1358
    %1360 = vrot.lane.b32.xlu0 %v803, 32
    %v1361 = vpop.permute.xlu0 %1360
    %1362 = vrot.lane.b32.xlu0 %v804, 32
    %v1363 = vpop.permute.xlu0 %1362
    %1364 = vrot.lane.b32.xlu0 %v805, 32
    %v1365 = vpop.permute.xlu0 %1364
    %1366 = vrot.lane.b32.xlu0 %v806, 32
    %v1367 = vpop.permute.xlu0 %1366
    %1368 = vrot.lane.b32.xlu0 %v807, 32
    %v1369 = vpop.permute.xlu0 %1368
    %1370 = vrot.lane.b32.xlu0 %v808, 32
    %v1371 = vpop.permute.xlu0 %1370
    %1372 = vrot.lane.b32.xlu0 %v809, 32
    %v1373 = vpop.permute.xlu0 %1372
    %1374 = vrot.lane.b32.xlu0 %v810, 32
    %v1375 = vpop.permute.xlu0 %1374
    %1376 = vrot.lane.b32.xlu0 %v811, 32
    %v1377 = vpop.permute.xlu0 %1376
    %1378 = vrot.lane.b32.xlu0 %v812, 32
    %v1379 = vpop.permute.xlu0 %1378
    %1380 = vrot.lane.b32.xlu0 %v813, 32
    %v1381 = vpop.permute.xlu0 %1380
    %1382 = vrot.lane.b32.xlu0 %v814, 32
    %v1383 = vpop.permute.xlu0 %1382
    %1384 = vrot.lane.b32.xlu0 %v815, 32
    %v1385 = vpop.permute.xlu0 %1384
    %1386 = vrot.lane.b32.xlu0 %v816, 32
    %v1387 = vpop.permute.xlu0 %1386
    %1388 = vrot.lane.b32.xlu0 %v817, 32
    %v1389 = vpop.permute.xlu0 %1388
    %1390 = vrot.lane.b32.xlu0 %v818, 32
    %v1391 = vpop.permute.xlu0 %1390
    %1392 = vrot.lane.b32.xlu0 %v819, 32
    %v1393 = vpop.permute.xlu0 %1392
    %1394 = vrot.lane.b32.xlu0 %v820, 32
    %v1395 = vpop.permute.xlu0 %1394
    %1396 = vrot.lane.b32.xlu0 %v821, 32
    %v1397 = vpop.permute.xlu0 %1396
    %v1462 = vmul.f32 %v694, %v1271
    %v1463 = vmul.f32 %v695, %v1273
    %v1464 = vmul.f32 %v696, %v1275
    %v1465 = vmul.f32 %v697, %v1277
    %v1466 = vmul.f32 %v698, %v1279
    %v1467 = vmul.f32 %v699, %v1281
    %v1468 = vmul.f32 %v700, %v1283
    %v1469 = vmul.f32 %v701, %v1285
    %v1470 = vmul.f32 %v702, %v1287
    %v1471 = vmul.f32 %v703, %v1289
    %v1472 = vmul.f32 %v704, %v1291
    %v1473 = vmul.f32 %v705, %v1293
    %v1474 = vmul.f32 %v706, %v1295
    %v1475 = vmul.f32 %v707, %v1297
    %v1476 = vmul.f32 %v708, %v1299
    %v1477 = vmul.f32 %v709, %v1301
    %v1478 = vmul.f32 %v710, %v1303
    %v1479 = vmul.f32 %v711, %v1305
    %v1480 = vmul.f32 %v712, %v1307
    %v1481 = vmul.f32 %v713, %v1309
    %v1482 = vmul.f32 %v714, %v1311
    %v1483 = vmul.f32 %v715, %v1313
    %v1484 = vmul.f32 %v716, %v1315
    %v1485 = vmul.f32 %v717, %v1317
    %v1486 = vmul.f32 %v718, %v1319
    %v1487 = vmul.f32 %v719, %v1321
    %v1488 = vmul.f32 %v720, %v1323
    %v1489 = vmul.f32 %v721, %v1325
    %v1490 = vmul.f32 %v722, %v1327
    %v1491 = vmul.f32 %v723, %v1329
    %v1492 = vmul.f32 %v724, %v1331
    %v1493 = vmul.f32 %v725, %v1333
    %v1494 = vmul.f32 %v726, %v1335
    %v1495 = vmul.f32 %v727, %v1337
    %v1496 = vmul.f32 %v728, %v1339
    %v1497 = vmul.f32 %v729, %v1341
    %v1498 = vmul.f32 %v730, %v1343
    %v1499 = vmul.f32 %v731, %v1345
    %v1500 = vmul.f32 %v732, %v1347
    %v1501 = vmul.f32 %v733, %v1349
    %v1502 = vmul.f32 %v734, %v1351
    %v1503 = vmul.f32 %v735, %v1353
    %v1504 = vmul.f32 %v736, %v1355
    %v1505 = vmul.f32 %v737, %v1357
    %v1506 = vmul.f32 %v738, %v1359
    %v1507 = vmul.f32 %v739, %v1361
    %v1508 = vmul.f32 %v740, %v1363
    %v1509 = vmul.f32 %v741, %v1365
    %v1510 = vmul.f32 %v742, %v1367
    %v1511 = vmul.f32 %v743, %v1369
    %v1512 = vmul.f32 %v744, %v1371
    %v1513 = vmul.f32 %v745, %v1373
    %v1514 = vmul.f32 %v746, %v1375
    %v1515 = vmul.f32 %v747, %v1377
    %v1516 = vmul.f32 %v748, %v1379
    %v1517 = vmul.f32 %v749, %v1381
    %v1518 = vmul.f32 %v750, %v1383
    %v1519 = vmul.f32 %v751, %v1385
    %v1520 = vmul.f32 %v752, %v1387
    %v1521 = vmul.f32 %v753, %v1389
    %v1522 = vmul.f32 %v754, %v1391
    %v1523 = vmul.f32 %v755, %v1393
    %v1524 = vmul.f32 %v756, %v1395
    %v1525 = vmul.f32 %v757, %v1397
    %1590 = vrot.lane.b32.xlu0 %v1462, 32
    %v1591 = vpop.permute.xlu0 %1590
    %1592 = vrot.lane.b32.xlu0 %v1463, 32
    %v1593 = vpop.permute.xlu0 %1592
    %1594 = vrot.lane.b32.xlu0 %v1464, 32
    %v1595 = vpop.permute.xlu0 %1594
    %1596 = vrot.lane.b32.xlu0 %v1465, 32
    %v1597 = vpop.permute.xlu0 %1596
    %1598 = vrot.lane.b32.xlu0 %v1466, 32
    %v1599 = vpop.permute.xlu0 %1598
    %1600 = vrot.lane.b32.xlu0 %v1467, 32
    %v1601 = vpop.permute.xlu0 %1600
    %1602 = vrot.lane.b32.xlu0 %v1468, 32
    %v1603 = vpop.permute.xlu0 %1602
    %1604 = vrot.lane.b32.xlu0 %v1469, 32
    %v1605 = vpop.permute.xlu0 %1604
    %1606 = vrot.lane.b32.xlu0 %v1470, 32
    %v1607 = vpop.permute.xlu0 %1606
    %1608 = vrot.lane.b32.xlu0 %v1471, 32
    %v1609 = vpop.permute.xlu0 %1608
    %1610 = vrot.lane.b32.xlu0 %v1472, 32
    %v1611 = vpop.permute.xlu0 %1610
    %1612 = vrot.lane.b32.xlu0 %v1473, 32
    %v1613 = vpop.permute.xlu0 %1612
    %1614 = vrot.lane.b32.xlu0 %v1474, 32
    %v1615 = vpop.permute.xlu0 %1614
    %1616 = vrot.lane.b32.xlu0 %v1475, 32
    %v1617 = vpop.permute.xlu0 %1616
    %1618 = vrot.lane.b32.xlu0 %v1476, 32
    %v1619 = vpop.permute.xlu0 %1618
    %1620 = vrot.lane.b32.xlu0 %v1477, 32
    %v1621 = vpop.permute.xlu0 %1620
    %1622 = vrot.lane.b32.xlu0 %v1478, 32
    %v1623 = vpop.permute.xlu0 %1622
    %1624 = vrot.lane.b32.xlu0 %v1479, 32
    %v1625 = vpop.permute.xlu0 %1624
    %1626 = vrot.lane.b32.xlu0 %v1480, 32
    %v1627 = vpop.permute.xlu0 %1626
    %1628 = vrot.lane.b32.xlu0 %v1481, 32
    %v1629 = vpop.permute.xlu0 %1628
    %1630 = vrot.lane.b32.xlu0 %v1482, 32
    %v1631 = vpop.permute.xlu0 %1630
    %1632 = vrot.lane.b32.xlu0 %v1483, 32
    %v1633 = vpop.permute.xlu0 %1632
    %1634 = vrot.lane.b32.xlu0 %v1484, 32
    %v1635 = vpop.permute.xlu0 %1634
    %1636 = vrot.lane.b32.xlu0 %v1485, 32
    %v1637 = vpop.permute.xlu0 %1636
    %1638 = vrot.lane.b32.xlu0 %v1486, 32
    %v1639 = vpop.permute.xlu0 %1638
    %1640 = vrot.lane.b32.xlu0 %v1487, 32
    %v1641 = vpop.permute.xlu0 %1640
    %1642 = vrot.lane.b32.xlu0 %v1488, 32
    %v1643 = vpop.permute.xlu0 %1642
    %1644 = vrot.lane.b32.xlu0 %v1489, 32
    %v1645 = vpop.permute.xlu0 %1644
    %1646 = vrot.lane.b32.xlu0 %v1490, 32
    %v1647 = vpop.permute.xlu0 %1646
    %1648 = vrot.lane.b32.xlu0 %v1491, 32
    %v1649 = vpop.permute.xlu0 %1648
    %1650 = vrot.lane.b32.xlu0 %v1492, 32
    %v1651 = vpop.permute.xlu0 %1650
    %1652 = vrot.lane.b32.xlu0 %v1493, 32
    %v1653 = vpop.permute.xlu0 %1652
    %1654 = vrot.lane.b32.xlu0 %v1494, 32
    %v1655 = vpop.permute.xlu0 %1654
    %1656 = vrot.lane.b32.xlu0 %v1495, 32
    %v1657 = vpop.permute.xlu0 %1656
    %1658 = vrot.lane.b32.xlu0 %v1496, 32
    %v1659 = vpop.permute.xlu0 %1658
    %1660 = vrot.lane.b32.xlu0 %v1497, 32
    %v1661 = vpop.permute.xlu0 %1660
    %1662 = vrot.lane.b32.xlu0 %v1498, 32
    %v1663 = vpop.permute.xlu0 %1662
    %1664 = vrot.lane.b32.xlu0 %v1499, 32
    %v1665 = vpop.permute.xlu0 %1664
    %1666 = vrot.lane.b32.xlu0 %v1500, 32
    %v1667 = vpop.permute.xlu0 %1666
    %1668 = vrot.lane.b32.xlu0 %v1501, 32
    %v1669 = vpop.permute.xlu0 %1668
    %1670 = vrot.lane.b32.xlu0 %v1502, 32
    %v1671 = vpop.permute.xlu0 %1670
    %1672 = vrot.lane.b32.xlu0 %v1503, 32
    %v1673 = vpop.permute.xlu0 %1672
    %1674 = vrot.lane.b32.xlu0 %v1504, 32
    %v1675 = vpop.permute.xlu0 %1674
    %1676 = vrot.lane.b32.xlu0 %v1505, 32
    %v1677 = vpop.permute.xlu0 %1676
    %1678 = vrot.lane.b32.xlu0 %v1506, 32
    %v1679 = vpop.permute.xlu0 %1678
    %1680 = vrot.lane.b32.xlu0 %v1507, 32
    %v1681 = vpop.permute.xlu0 %1680
    %1682 = vrot.lane.b32.xlu0 %v1508, 32
    %v1683 = vpop.permute.xlu0 %1682
    %1684 = vrot.lane.b32.xlu0 %v1509, 32
    %v1685 = vpop.permute.xlu0 %1684
    %1686 = vrot.lane.b32.xlu0 %v1510, 32
    %v1687 = vpop.permute.xlu0 %1686
    %1688 = vrot.lane.b32.xlu0 %v1511, 32
    %v1689 = vpop.permute.xlu0 %1688
    %1690 = vrot.lane.b32.xlu0 %v1512, 32
    %v1691 = vpop.permute.xlu0 %1690
    %1692 = vrot.lane.b32.xlu0 %v1513, 32
    %v1693 = vpop.permute.xlu0 %1692
    %1694 = vrot.lane.b32.xlu0 %v1514, 32
    %v1695 = vpop.permute.xlu0 %1694
    %1696 = vrot.lane.b32.xlu0 %v1515, 32
    %v1697 = vpop.permute.xlu0 %1696
    %1698 = vrot.lane.b32.xlu0 %v1516, 32
    %v1699 = vpop.permute.xlu0 %1698
    %1700 = vrot.lane.b32.xlu0 %v1517, 32
    %v1701 = vpop.permute.xlu0 %1700
    %1702 = vrot.lane.b32.xlu0 %v1518, 32
    %v1703 = vpop.permute.xlu0 %1702
    %1704 = vrot.lane.b32.xlu0 %v1519, 32
    %v1705 = vpop.permute.xlu0 %1704
    %1706 = vrot.lane.b32.xlu0 %v1520, 32
    %v1707 = vpop.permute.xlu0 %1706
    %1708 = vrot.lane.b32.xlu0 %v1521, 32
    %v1709 = vpop.permute.xlu0 %1708
    %1710 = vrot.lane.b32.xlu0 %v1522, 32
    %v1711 = vpop.permute.xlu0 %1710
    %1712 = vrot.lane.b32.xlu0 %v1523, 32
    %v1713 = vpop.permute.xlu0 %1712
    %1714 = vrot.lane.b32.xlu0 %v1524, 32
    %v1715 = vpop.permute.xlu0 %1714
    %1716 = vrot.lane.b32.xlu0 %v1525, 32
    %v1717 = vpop.permute.xlu0 %1716
    %v1782 = vadd.f32 %v1142, %v1591
    %v1783 = vadd.f32 %v1143, %v1593
    %v1784 = vadd.f32 %v1144, %v1595
    %v1785 = vadd.f32 %v1145, %v1597
    %v1786 = vadd.f32 %v1146, %v1599
    %v1787 = vadd.f32 %v1147, %v1601
    %v1788 = vadd.f32 %v1148, %v1603
    %v1789 = vadd.f32 %v1149, %v1605
    %v1790 = vadd.f32 %v1150, %v1607
    %v1791 = vadd.f32 %v1151, %v1609
    %v1792 = vadd.f32 %v1152, %v1611
    %v1793 = vadd.f32 %v1153, %v1613
    %v1794 = vadd.f32 %v1154, %v1615
    %v1795 = vadd.f32 %v1155, %v1617
    %v1796 = vadd.f32 %v1156, %v1619
    %v1797 = vadd.f32 %v1157, %v1621
    %v1798 = vadd.f32 %v1158, %v1623
    %v1799 = vadd.f32 %v1159, %v1625
    %v1800 = vadd.f32 %v1160, %v1627
    %v1801 = vadd.f32 %v1161, %v1629
    %v1802 = vadd.f32 %v1162, %v1631
    %v1803 = vadd.f32 %v1163, %v1633
    %v1804 = vadd.f32 %v1164, %v1635
    %v1805 = vadd.f32 %v1165, %v1637
    %v1806 = vadd.f32 %v1166, %v1639
    %v1807 = vadd.f32 %v1167, %v1641
    %v1808 = vadd.f32 %v1168, %v1643
    %v1809 = vadd.f32 %v1169, %v1645
    %v1810 = vadd.f32 %v1170, %v1647
    %v1811 = vadd.f32 %v1171, %v1649
    %v1812 = vadd.f32 %v1172, %v1651
    %v1813 = vadd.f32 %v1173, %v1653
    %v1814 = vadd.f32 %v1174, %v1655
    %v1815 = vadd.f32 %v1175, %v1657
    %v1816 = vadd.f32 %v1176, %v1659
    %v1817 = vadd.f32 %v1177, %v1661
    %v1818 = vadd.f32 %v1178, %v1663
    %v1819 = vadd.f32 %v1179, %v1665
    %v1820 = vadd.f32 %v1180, %v1667
    %v1821 = vadd.f32 %v1181, %v1669
    %v1822 = vadd.f32 %v1182, %v1671
    %v1823 = vadd.f32 %v1183, %v1673
    %v1824 = vadd.f32 %v1184, %v1675
    %v1825 = vadd.f32 %v1185, %v1677
    %v1826 = vadd.f32 %v1186, %v1679
    %v1827 = vadd.f32 %v1187, %v1681
    %v1828 = vadd.f32 %v1188, %v1683
    %v1829 = vadd.f32 %v1189, %v1685
    %v1830 = vadd.f32 %v1190, %v1687
    %v1831 = vadd.f32 %v1191, %v1689
    %v1832 = vadd.f32 %v1192, %v1691
    %v1833 = vadd.f32 %v1193, %v1693
    %v1834 = vadd.f32 %v1194, %v1695
    %v1835 = vadd.f32 %v1195, %v1697
    %v1836 = vadd.f32 %v1196, %v1699
    %v1837 = vadd.f32 %v1197, %v1701
    %v1838 = vadd.f32 %v1198, %v1703
    %v1839 = vadd.f32 %v1199, %v1705
    %v1840 = vadd.f32 %v1200, %v1707
    %v1841 = vadd.f32 %v1201, %v1709
    %v1842 = vadd.f32 %v1202, %v1711
    %v1843 = vadd.f32 %v1203, %v1713
    %v1844 = vadd.f32 %v1204, %v1715
    %v1845 = vadd.f32 %v1205, %v1717
    %v1846 = vtanh.pop %v1782
    %v1847 = vtanh.pop %v1783
    %v1848 = vtanh.pop %v1784
    %v1849 = vtanh.pop %v1785
    %v1850 = vtanh.pop %v1786
    %v1851 = vtanh.pop %v1787
    %v1852 = vtanh.pop %v1788
    %v1853 = vtanh.pop %v1789
    %v1854 = vtanh.pop %v1790
    %v1855 = vtanh.pop %v1791
    %v1856 = vtanh.pop %v1792
    %v1857 = vtanh.pop %v1793
    %v1858 = vtanh.pop %v1794
    %v1859 = vtanh.pop %v1795
    %v1860 = vtanh.pop %v1796
    %v1861 = vtanh.pop %v1797
    %v1862 = vtanh.pop %v1798
    %v1863 = vtanh.pop %v1799
    %v1864 = vtanh.pop %v1800
    %v1865 = vtanh.pop %v1801
    %v1866 = vtanh.pop %v1802
    %v1867 = vtanh.pop %v1803
    %v1868 = vtanh.pop %v1804
    %v1869 = vtanh.pop %v1805
    %v1870 = vtanh.pop %v1806
    %v1871 = vtanh.pop %v1807
    %v1872 = vtanh.pop %v1808
    %v1873 = vtanh.pop %v1809
    %v1874 = vtanh.pop %v1810
    %v1875 = vtanh.pop %v1811
    %v1876 = vtanh.pop %v1812
    %v1877 = vtanh.pop %v1813
    %v1878 = vtanh.pop %v1814
    %v1879 = vtanh.pop %v1815
    %v1880 = vtanh.pop %v1816
    %v1881 = vtanh.pop %v1817
    %v1882 = vtanh.pop %v1818
    %v1883 = vtanh.pop %v1819
    %v1884 = vtanh.pop %v1820
    %v1885 = vtanh.pop %v1821
    %v1886 = vtanh.pop %v1822
    %v1887 = vtanh.pop %v1823
    %v1888 = vtanh.pop %v1824
    %v1889 = vtanh.pop %v1825
    %v1890 = vtanh.pop %v1826
    %v1891 = vtanh.pop %v1827
    %v1892 = vtanh.pop %v1828
    %v1893 = vtanh.pop %v1829
    %v1894 = vtanh.pop %v1830
    %v1895 = vtanh.pop %v1831
    %v1896 = vtanh.pop %v1832
    %v1897 = vtanh.pop %v1833
    %v1898 = vtanh.pop %v1834
    %v1899 = vtanh.pop %v1835
    %v1900 = vtanh.pop %v1836
    %v1901 = vtanh.pop %v1837
    %v1902 = vtanh.pop %v1838
    %v1903 = vtanh.pop %v1839
    %v1904 = vtanh.pop %v1840
    %v1905 = vtanh.pop %v1841
    %v1906 = vtanh.pop %v1842
    %v1907 = vtanh.pop %v1843
    %v1908 = vtanh.pop %v1844
    %v1909 = vtanh.pop %v1845
    %1974 = vrot.lane.b32.xlu0 %v1846, 32
    %v1975 = vpop.permute.xlu0 %1974
    %1976 = vrot.lane.b32.xlu0 %v1847, 32
    %v1977 = vpop.permute.xlu0 %1976
    %1978 = vrot.lane.b32.xlu0 %v1848, 32
    %v1979 = vpop.permute.xlu0 %1978
    %1980 = vrot.lane.b32.xlu0 %v1849, 32
    %v1981 = vpop.permute.xlu0 %1980
    %1982 = vrot.lane.b32.xlu0 %v1850, 32
    %v1983 = vpop.permute.xlu0 %1982
    %1984 = vrot.lane.b32.xlu0 %v1851, 32
    %v1985 = vpop.permute.xlu0 %1984
    %1986 = vrot.lane.b32.xlu0 %v1852, 32
    %v1987 = vpop.permute.xlu0 %1986
    %1988 = vrot.lane.b32.xlu0 %v1853, 32
    %v1989 = vpop.permute.xlu0 %1988
    %1990 = vrot.lane.b32.xlu0 %v1854, 32
    %v1991 = vpop.permute.xlu0 %1990
    %1992 = vrot.lane.b32.xlu0 %v1855, 32
    %v1993 = vpop.permute.xlu0 %1992
    %1994 = vrot.lane.b32.xlu0 %v1856, 32
    %v1995 = vpop.permute.xlu0 %1994
    %1996 = vrot.lane.b32.xlu0 %v1857, 32
    %v1997 = vpop.permute.xlu0 %1996
    %1998 = vrot.lane.b32.xlu0 %v1858, 32
    %v1999 = vpop.permute.xlu0 %1998
    %2000 = vrot.lane.b32.xlu0 %v1859, 32
    %v2001 = vpop.permute.xlu0 %2000
    %2002 = vrot.lane.b32.xlu0 %v1860, 32
    %v2003 = vpop.permute.xlu0 %2002
    %2004 = vrot.lane.b32.xlu0 %v1861, 32
    %v2005 = vpop.permute.xlu0 %2004
    %2006 = vrot.lane.b32.xlu0 %v1862, 32
    %v2007 = vpop.permute.xlu0 %2006
    %2008 = vrot.lane.b32.xlu0 %v1863, 32
    %v2009 = vpop.permute.xlu0 %2008
    %2010 = vrot.lane.b32.xlu0 %v1864, 32
    %v2011 = vpop.permute.xlu0 %2010
    %2012 = vrot.lane.b32.xlu0 %v1865, 32
    %v2013 = vpop.permute.xlu0 %2012
    %2014 = vrot.lane.b32.xlu0 %v1866, 32
    %v2015 = vpop.permute.xlu0 %2014
    %2016 = vrot.lane.b32.xlu0 %v1867, 32
    %v2017 = vpop.permute.xlu0 %2016
    %2018 = vrot.lane.b32.xlu0 %v1868, 32
    %v2019 = vpop.permute.xlu0 %2018
    %2020 = vrot.lane.b32.xlu0 %v1869, 32
    %v2021 = vpop.permute.xlu0 %2020
    %2022 = vrot.lane.b32.xlu0 %v1870, 32
    %v2023 = vpop.permute.xlu0 %2022
    %2024 = vrot.lane.b32.xlu0 %v1871, 32
    %v2025 = vpop.permute.xlu0 %2024
    %2026 = vrot.lane.b32.xlu0 %v1872, 32
    %v2027 = vpop.permute.xlu0 %2026
    %2028 = vrot.lane.b32.xlu0 %v1873, 32
    %v2029 = vpop.permute.xlu0 %2028
    %2030 = vrot.lane.b32.xlu0 %v1874, 32
    %v2031 = vpop.permute.xlu0 %2030
    %2032 = vrot.lane.b32.xlu0 %v1875, 32
    %v2033 = vpop.permute.xlu0 %2032
    %2034 = vrot.lane.b32.xlu0 %v1876, 32
    %v2035 = vpop.permute.xlu0 %2034
    %2036 = vrot.lane.b32.xlu0 %v1877, 32
    %v2037 = vpop.permute.xlu0 %2036
    %2038 = vrot.lane.b32.xlu0 %v1878, 32
    %v2039 = vpop.permute.xlu0 %2038
    %2040 = vrot.lane.b32.xlu0 %v1879, 32
    %v2041 = vpop.permute.xlu0 %2040
    %2042 = vrot.lane.b32.xlu0 %v1880, 32
    %v2043 = vpop.permute.xlu0 %2042
    %2044 = vrot.lane.b32.xlu0 %v1881, 32
    %v2045 = vpop.permute.xlu0 %2044
    %2046 = vrot.lane.b32.xlu0 %v1882, 32
    %v2047 = vpop.permute.xlu0 %2046
    %2048 = vrot.lane.b32.xlu0 %v1883, 32
    %v2049 = vpop.permute.xlu0 %2048
    %2050 = vrot.lane.b32.xlu0 %v1884, 32
    %v2051 = vpop.permute.xlu0 %2050
    %2052 = vrot.lane.b32.xlu0 %v1885, 32
    %v2053 = vpop.permute.xlu0 %2052
    %2054 = vrot.lane.b32.xlu0 %v1886, 32
    %v2055 = vpop.permute.xlu0 %2054
    %2056 = vrot.lane.b32.xlu0 %v1887, 32
    %v2057 = vpop.permute.xlu0 %2056
    %2058 = vrot.lane.b32.xlu0 %v1888, 32
    %v2059 = vpop.permute.xlu0 %2058
    %2060 = vrot.lane.b32.xlu0 %v1889, 32
    %v2061 = vpop.permute.xlu0 %2060
    %2062 = vrot.lane.b32.xlu0 %v1890, 32
    %v2063 = vpop.permute.xlu0 %2062
    %2064 = vrot.lane.b32.xlu0 %v1891, 32
    %v2065 = vpop.permute.xlu0 %2064
    %2066 = vrot.lane.b32.xlu0 %v1892, 32
    %v2067 = vpop.permute.xlu0 %2066
    %2068 = vrot.lane.b32.xlu0 %v1893, 32
    %v2069 = vpop.permute.xlu0 %2068
    %2070 = vrot.lane.b32.xlu0 %v1894, 32
    %v2071 = vpop.permute.xlu0 %2070
    %2072 = vrot.lane.b32.xlu0 %v1895, 32
    %v2073 = vpop.permute.xlu0 %2072
    %2074 = vrot.lane.b32.xlu0 %v1896, 32
    %v2075 = vpop.permute.xlu0 %2074
    %2076 = vrot.lane.b32.xlu0 %v1897, 32
    %v2077 = vpop.permute.xlu0 %2076
    %2078 = vrot.lane.b32.xlu0 %v1898, 32
    %v2079 = vpop.permute.xlu0 %2078
    %2080 = vrot.lane.b32.xlu0 %v1899, 32
    %v2081 = vpop.permute.xlu0 %2080
    %2082 = vrot.lane.b32.xlu0 %v1900, 32
    %v2083 = vpop.permute.xlu0 %2082
    %2084 = vrot.lane.b32.xlu0 %v1901, 32
    %v2085 = vpop.permute.xlu0 %2084
    %2086 = vrot.lane.b32.xlu0 %v1902, 32
    %v2087 = vpop.permute.xlu0 %2086
    %2088 = vrot.lane.b32.xlu0 %v1903, 32
    %v2089 = vpop.permute.xlu0 %2088
    %2090 = vrot.lane.b32.xlu0 %v1904, 32
    %v2091 = vpop.permute.xlu0 %2090
    %2092 = vrot.lane.b32.xlu0 %v1905, 32
    %v2093 = vpop.permute.xlu0 %2092
    %2094 = vrot.lane.b32.xlu0 %v1906, 32
    %v2095 = vpop.permute.xlu0 %2094
    %2096 = vrot.lane.b32.xlu0 %v1907, 32
    %v2097 = vpop.permute.xlu0 %2096
    %2098 = vrot.lane.b32.xlu0 %v1908, 32
    %v2099 = vpop.permute.xlu0 %2098
    %2100 = vrot.lane.b32.xlu0 %v1909, 32
    %v2101 = vpop.permute.xlu0 %2100
    %v2166 = vmul.f32 %v694, %v1975
    %v2167 = vmul.f32 %v695, %v1977
    %v2168 = vmul.f32 %v696, %v1979
    %v2169 = vmul.f32 %v697, %v1981
    %v2170 = vmul.f32 %v698, %v1983
    %v2171 = vmul.f32 %v699, %v1985
    %v2172 = vmul.f32 %v700, %v1987
    %v2173 = vmul.f32 %v701, %v1989
    %v2174 = vmul.f32 %v702, %v1991
    %v2175 = vmul.f32 %v703, %v1993
    %v2176 = vmul.f32 %v704, %v1995
    %v2177 = vmul.f32 %v705, %v1997
    %v2178 = vmul.f32 %v706, %v1999
    %v2179 = vmul.f32 %v707, %v2001
    %v2180 = vmul.f32 %v708, %v2003
    %v2181 = vmul.f32 %v709, %v2005
    %v2182 = vmul.f32 %v710, %v2007
    %v2183 = vmul.f32 %v711, %v2009
    %v2184 = vmul.f32 %v712, %v2011
    %v2185 = vmul.f32 %v713, %v2013
    %v2186 = vmul.f32 %v714, %v2015
    %v2187 = vmul.f32 %v715, %v2017
    %v2188 = vmul.f32 %v716, %v2019
    %v2189 = vmul.f32 %v717, %v2021
    %v2190 = vmul.f32 %v718, %v2023
    %v2191 = vmul.f32 %v719, %v2025
    %v2192 = vmul.f32 %v720, %v2027
    %v2193 = vmul.f32 %v721, %v2029
    %v2194 = vmul.f32 %v722, %v2031
    %v2195 = vmul.f32 %v723, %v2033
    %v2196 = vmul.f32 %v724, %v2035
    %v2197 = vmul.f32 %v725, %v2037
    %v2198 = vmul.f32 %v726, %v2039
    %v2199 = vmul.f32 %v727, %v2041
    %v2200 = vmul.f32 %v728, %v2043
    %v2201 = vmul.f32 %v729, %v2045
    %v2202 = vmul.f32 %v730, %v2047
    %v2203 = vmul.f32 %v731, %v2049
    %v2204 = vmul.f32 %v732, %v2051
    %v2205 = vmul.f32 %v733, %v2053
    %v2206 = vmul.f32 %v734, %v2055
    %v2207 = vmul.f32 %v735, %v2057
    %v2208 = vmul.f32 %v736, %v2059
    %v2209 = vmul.f32 %v737, %v2061
    %v2210 = vmul.f32 %v738, %v2063
    %v2211 = vmul.f32 %v739, %v2065
    %v2212 = vmul.f32 %v740, %v2067
    %v2213 = vmul.f32 %v741, %v2069
    %v2214 = vmul.f32 %v742, %v2071
    %v2215 = vmul.f32 %v743, %v2073
    %v2216 = vmul.f32 %v744, %v2075
    %v2217 = vmul.f32 %v745, %v2077
    %v2218 = vmul.f32 %v746, %v2079
    %v2219 = vmul.f32 %v747, %v2081
    %v2220 = vmul.f32 %v748, %v2083
    %v2221 = vmul.f32 %v749, %v2085
    %v2222 = vmul.f32 %v750, %v2087
    %v2223 = vmul.f32 %v751, %v2089
    %v2224 = vmul.f32 %v752, %v2091
    %v2225 = vmul.f32 %v753, %v2093
    %v2226 = vmul.f32 %v754, %v2095
    %v2227 = vmul.f32 %v755, %v2097
    %v2228 = vmul.f32 %v756, %v2099
    %v2229 = vmul.f32 %v757, %v2101
    %2262 = vrot.lane.b32.xlu0 %v2166, 64
    %v2263 = vpop.permute.xlu0 %2262
    %2264 = vrot.lane.b32.xlu0 %v2167, 64
    %v2265 = vpop.permute.xlu0 %2264
    %2266 = vrot.lane.b32.xlu0 %v2168, 64
    %v2267 = vpop.permute.xlu0 %2266
    %2268 = vrot.lane.b32.xlu0 %v2169, 64
    %v2269 = vpop.permute.xlu0 %2268
    %2270 = vrot.lane.b32.xlu0 %v2170, 64
    %v2271 = vpop.permute.xlu0 %2270
    %2272 = vrot.lane.b32.xlu0 %v2171, 64
    %v2273 = vpop.permute.xlu0 %2272
    %2274 = vrot.lane.b32.xlu0 %v2172, 64
    %v2275 = vpop.permute.xlu0 %2274
    %2276 = vrot.lane.b32.xlu0 %v2173, 64
    %v2277 = vpop.permute.xlu0 %2276
    %2278 = vrot.lane.b32.xlu0 %v2174, 64
    %v2279 = vpop.permute.xlu0 %2278
    %2280 = vrot.lane.b32.xlu0 %v2175, 64
    %v2281 = vpop.permute.xlu0 %2280
    %2282 = vrot.lane.b32.xlu0 %v2176, 64
    %v2283 = vpop.permute.xlu0 %2282
    %2284 = vrot.lane.b32.xlu0 %v2177, 64
    %v2285 = vpop.permute.xlu0 %2284
    %2286 = vrot.lane.b32.xlu0 %v2178, 64
    %v2287 = vpop.permute.xlu0 %2286
    %2288 = vrot.lane.b32.xlu0 %v2179, 64
    %v2289 = vpop.permute.xlu0 %2288
    %2290 = vrot.lane.b32.xlu0 %v2180, 64
    %v2291 = vpop.permute.xlu0 %2290
    %2292 = vrot.lane.b32.xlu0 %v2181, 64
    %v2293 = vpop.permute.xlu0 %2292
    %2294 = vrot.lane.b32.xlu0 %v2182, 64
    %v2295 = vpop.permute.xlu0 %2294
    %2296 = vrot.lane.b32.xlu0 %v2183, 64
    %v2297 = vpop.permute.xlu0 %2296
    %2298 = vrot.lane.b32.xlu0 %v2184, 64
    %v2299 = vpop.permute.xlu0 %2298
    %2300 = vrot.lane.b32.xlu0 %v2185, 64
    %v2301 = vpop.permute.xlu0 %2300
    %2302 = vrot.lane.b32.xlu0 %v2186, 64
    %v2303 = vpop.permute.xlu0 %2302
    %2304 = vrot.lane.b32.xlu0 %v2187, 64
    %v2305 = vpop.permute.xlu0 %2304
    %2306 = vrot.lane.b32.xlu0 %v2188, 64
    %v2307 = vpop.permute.xlu0 %2306
    %2308 = vrot.lane.b32.xlu0 %v2189, 64
    %v2309 = vpop.permute.xlu0 %2308
    %2310 = vrot.lane.b32.xlu0 %v2190, 64
    %v2311 = vpop.permute.xlu0 %2310
    %2312 = vrot.lane.b32.xlu0 %v2191, 64
    %v2313 = vpop.permute.xlu0 %2312
    %2314 = vrot.lane.b32.xlu0 %v2192, 64
    %v2315 = vpop.permute.xlu0 %2314
    %2316 = vrot.lane.b32.xlu0 %v2193, 64
    %v2317 = vpop.permute.xlu0 %2316
    %2318 = vrot.lane.b32.xlu0 %v2194, 64
    %v2319 = vpop.permute.xlu0 %2318
    %2320 = vrot.lane.b32.xlu0 %v2195, 64
    %v2321 = vpop.permute.xlu0 %2320
    %2322 = vrot.lane.b32.xlu0 %v2196, 64
    %v2323 = vpop.permute.xlu0 %2322
    %2324 = vrot.lane.b32.xlu0 %v2197, 64
    %v2325 = vpop.permute.xlu0 %2324
    %2390 = vrot.lane.b32.xlu0 %v1814, 64
    %v2391 = vpop.permute.xlu0 %2390
    %2392 = vrot.lane.b32.xlu0 %v1815, 64
    %v2393 = vpop.permute.xlu0 %2392
    %2394 = vrot.lane.b32.xlu0 %v1816, 64
    %v2395 = vpop.permute.xlu0 %2394
    %2396 = vrot.lane.b32.xlu0 %v1817, 64
    %v2397 = vpop.permute.xlu0 %2396
    %2398 = vrot.lane.b32.xlu0 %v1818, 64
    %v2399 = vpop.permute.xlu0 %2398
    %2400 = vrot.lane.b32.xlu0 %v1819, 64
    %v2401 = vpop.permute.xlu0 %2400
    %2402 = vrot.lane.b32.xlu0 %v1820, 64
    %v2403 = vpop.permute.xlu0 %2402
    %2404 = vrot.lane.b32.xlu0 %v1821, 64
    %v2405 = vpop.permute.xlu0 %2404
    %2406 = vrot.lane.b32.xlu0 %v1822, 64
    %v2407 = vpop.permute.xlu0 %2406
    %2408 = vrot.lane.b32.xlu0 %v1823, 64
    %v2409 = vpop.permute.xlu0 %2408
    %2410 = vrot.lane.b32.xlu0 %v1824, 64
    %v2411 = vpop.permute.xlu0 %2410
    %2412 = vrot.lane.b32.xlu0 %v1825, 64
    %v2413 = vpop.permute.xlu0 %2412
    %2414 = vrot.lane.b32.xlu0 %v1826, 64
    %v2415 = vpop.permute.xlu0 %2414
    %2416 = vrot.lane.b32.xlu0 %v1827, 64
    %v2417 = vpop.permute.xlu0 %2416
    %2418 = vrot.lane.b32.xlu0 %v1828, 64
    %v2419 = vpop.permute.xlu0 %2418
    %2420 = vrot.lane.b32.xlu0 %v1829, 64
    %v2421 = vpop.permute.xlu0 %2420
    %2422 = vrot.lane.b32.xlu0 %v1830, 64
    %v2423 = vpop.permute.xlu0 %2422
    %2424 = vrot.lane.b32.xlu0 %v1831, 64
    %v2425 = vpop.permute.xlu0 %2424
    %2426 = vrot.lane.b32.xlu0 %v1832, 64
    %v2427 = vpop.permute.xlu0 %2426
    %2428 = vrot.lane.b32.xlu0 %v1833, 64
    %v2429 = vpop.permute.xlu0 %2428
    %2430 = vrot.lane.b32.xlu0 %v1834, 64
    %v2431 = vpop.permute.xlu0 %2430
    %2432 = vrot.lane.b32.xlu0 %v1835, 64
    %v2433 = vpop.permute.xlu0 %2432
    %2434 = vrot.lane.b32.xlu0 %v1836, 64
    %v2435 = vpop.permute.xlu0 %2434
    %2436 = vrot.lane.b32.xlu0 %v1837, 64
    %v2437 = vpop.permute.xlu0 %2436
    %2438 = vrot.lane.b32.xlu0 %v1838, 64
    %v2439 = vpop.permute.xlu0 %2438
    %2440 = vrot.lane.b32.xlu0 %v1839, 64
    %v2441 = vpop.permute.xlu0 %2440
    %2442 = vrot.lane.b32.xlu0 %v1840, 64
    %v2443 = vpop.permute.xlu0 %2442
    %2444 = vrot.lane.b32.xlu0 %v1841, 64
    %v2445 = vpop.permute.xlu0 %2444
    %2446 = vrot.lane.b32.xlu0 %v1842, 64
    %v2447 = vpop.permute.xlu0 %2446
    %2448 = vrot.lane.b32.xlu0 %v1843, 64
    %v2449 = vpop.permute.xlu0 %2448
    %2450 = vrot.lane.b32.xlu0 %v1844, 64
    %v2451 = vpop.permute.xlu0 %2450
    %2452 = vrot.lane.b32.xlu0 %v1845, 64
    %v2453 = vpop.permute.xlu0 %2452
    %vm2486 = vcmask 261120
    %v2487 = vsel %vm2486, %v2263, %v1782
    %v2488 = vsel %vm2486, %v2265, %v1783
    %v2489 = vsel %vm2486, %v2267, %v1784
    %v2490 = vsel %vm2486, %v2269, %v1785
    %v2491 = vsel %vm2486, %v2271, %v1786
    %v2492 = vsel %vm2486, %v2273, %v1787
    %v2493 = vsel %vm2486, %v2275, %v1788
    %v2494 = vsel %vm2486, %v2277, %v1789
    %v2495 = vsel %vm2486, %v2279, %v1790
    %v2496 = vsel %vm2486, %v2281, %v1791
    %v2497 = vsel %vm2486, %v2283, %v1792
    %v2498 = vsel %vm2486, %v2285, %v1793
    %v2499 = vsel %vm2486, %v2287, %v1794
    %v2500 = vsel %vm2486, %v2289, %v1795
    %v2501 = vsel %vm2486, %v2291, %v1796
    %v2502 = vsel %vm2486, %v2293, %v1797
    %v2503 = vsel %vm2486, %v2295, %v1798
    %v2504 = vsel %vm2486, %v2297, %v1799
    %v2505 = vsel %vm2486, %v2299, %v1800
    %v2506 = vsel %vm2486, %v2301, %v1801
    %v2507 = vsel %vm2486, %v2303, %v1802
    %v2508 = vsel %vm2486, %v2305, %v1803
    %v2509 = vsel %vm2486, %v2307, %v1804
    %v2510 = vsel %vm2486, %v2309, %v1805
    %v2511 = vsel %vm2486, %v2311, %v1806
    %v2512 = vsel %vm2486, %v2313, %v1807
    %v2513 = vsel %vm2486, %v2315, %v1808
    %v2514 = vsel %vm2486, %v2317, %v1809
    %v2515 = vsel %vm2486, %v2319, %v1810
    %v2516 = vsel %vm2486, %v2321, %v1811
    %v2517 = vsel %vm2486, %v2323, %v1812
    %v2518 = vsel %vm2486, %v2325, %v1813
    %vm2519 = vcmask 523264
    %v2520 = vsel %vm2519, %v2487, %v2198
    %v2521 = vsel %vm2519, %v2488, %v2199
    %v2522 = vsel %vm2519, %v2489, %v2200
    %v2523 = vsel %vm2519, %v2490, %v2201
    %v2524 = vsel %vm2519, %v2491, %v2202
    %v2525 = vsel %vm2519, %v2492, %v2203
    %v2526 = vsel %vm2519, %v2493, %v2204
    %v2527 = vsel %vm2519, %v2494, %v2205
    %v2528 = vsel %vm2519, %v2495, %v2206
    %v2529 = vsel %vm2519, %v2496, %v2207
    %v2530 = vsel %vm2519, %v2497, %v2208
    %v2531 = vsel %vm2519, %v2498, %v2209
    %v2532 = vsel %vm2519, %v2499, %v2210
    %v2533 = vsel %vm2519, %v2500, %v2211
    %v2534 = vsel %vm2519, %v2501, %v2212
    %v2535 = vsel %vm2519, %v2502, %v2213
    %v2536 = vsel %vm2519, %v2503, %v2214
    %v2537 = vsel %vm2519, %v2504, %v2215
    %v2538 = vsel %vm2519, %v2505, %v2216
    %v2539 = vsel %vm2519, %v2506, %v2217
    %v2540 = vsel %vm2519, %v2507, %v2218
    %v2541 = vsel %vm2519, %v2508, %v2219
    %v2542 = vsel %vm2519, %v2509, %v2220
    %v2543 = vsel %vm2519, %v2510, %v2221
    %v2544 = vsel %vm2519, %v2511, %v2222
    %v2545 = vsel %vm2519, %v2512, %v2223
    %v2546 = vsel %vm2519, %v2513, %v2224
    %v2547 = vsel %vm2519, %v2514, %v2225
    %v2548 = vsel %vm2519, %v2515, %v2226
    %v2549 = vsel %vm2519, %v2516, %v2227
    %v2550 = vsel %vm2519, %v2517, %v2228
    %v2551 = vsel %vm2519, %v2518, %v2229
    %vm2552 = vcmask 785408
    %v2553 = vsel %vm2552, %v2520, %v2391
    %v2554 = vsel %vm2552, %v2521, %v2393
    %v2555 = vsel %vm2552, %v2522, %v2395
    %v2556 = vsel %vm2552, %v2523, %v2397
    %v2557 = vsel %vm2552, %v2524, %v2399
    %v2558 = vsel %vm2552, %v2525, %v2401
    %v2559 = vsel %vm2552, %v2526, %v2403
    %v2560 = vsel %vm2552, %v2527, %v2405
    %v2561 = vsel %vm2552, %v2528, %v2407
    %v2562 = vsel %vm2552, %v2529, %v2409
    %v2563 = vsel %vm2552, %v2530, %v2411
    %v2564 = vsel %vm2552, %v2531, %v2413
    %v2565 = vsel %vm2552, %v2532, %v2415
    %v2566 = vsel %vm2552, %v2533, %v2417
    %v2567 = vsel %vm2552, %v2534, %v2419
    %v2568 = vsel %vm2552, %v2535, %v2421
    %v2569 = vsel %vm2552, %v2536, %v2423
    %v2570 = vsel %vm2552, %v2537, %v2425
    %v2571 = vsel %vm2552, %v2538, %v2427
    %v2572 = vsel %vm2552, %v2539, %v2429
    %v2573 = vsel %vm2552, %v2540, %v2431
    %v2574 = vsel %vm2552, %v2541, %v2433
    %v2575 = vsel %vm2552, %v2542, %v2435
    %v2576 = vsel %vm2552, %v2543, %v2437
    %v2577 = vsel %vm2552, %v2544, %v2439
    %v2578 = vsel %vm2552, %v2545, %v2441
    %v2579 = vsel %vm2552, %v2546, %v2443
    %v2580 = vsel %vm2552, %v2547, %v2445
    %v2581 = vsel %vm2552, %v2548, %v2447
    %v2582 = vsel %vm2552, %v2549, %v2449
    %v2583 = vsel %vm2552, %v2550, %v2451
    %v2584 = vsel %vm2552, %v2551, %v2453
    %2585 = vst [vmem:[#allocation5] sm:$0xff] %v2553
    %2586 = vst [vmem:[#allocation5 + $0x8] sm:$0xff] %v2554
    %2587 = vst [vmem:[#allocation5 + $0x10] sm:$0xff] %v2555
    %2588 = vst [vmem:[#allocation5 + $0x18] sm:$0xff] %v2556
    %2589 = vst [vmem:[#allocation5 + $0x20] sm:$0xff] %v2557
    %2590 = vst [vmem:[#allocation5 + $0x28] sm:$0xff] %v2558
    %2591 = vst [vmem:[#allocation5 + $0x30] sm:$0xff] %v2559
    %2592 = vst [vmem:[#allocation5 + $0x38] sm:$0xff] %v2560
    %2593 = vst [vmem:[#allocation5 + $0x40] sm:$0xff] %v2561
    %2594 = vst [vmem:[#allocation5 + $0x48] sm:$0xff] %v2562
    %2595 = vst [vmem:[#allocation5 + $0x50] sm:$0xff] %v2563
    %2596 = vst [vmem:[#allocation5 + $0x58] sm:$0xff] %v2564
    %2597 = vst [vmem:[#allocation5 + $0x60] sm:$0xff] %v2565
    %2598 = vst [vmem:[#allocation5 + $0x68] sm:$0xff] %v2566
    %2599 = vst [vmem:[#allocation5 + $0x70] sm:$0xff] %v2567
    %2600 = vst [vmem:[#allocation5 + $0x78] sm:$0xff] %v2568
    %2601 = vst [vmem:[#allocation5 + $0x80] sm:$0xff] %v2569
    %2602 = vst [vmem:[#allocation5 + $0x88] sm:$0xff] %v2570
    %2603 = vst [vmem:[#allocation5 + $0x90] sm:$0xff] %v2571
    %2604 = vst [vmem:[#allocation5 + $0x98] sm:$0xff] %v2572
    %2605 = vst [vmem:[#allocation5 + $0xa0] sm:$0xff] %v2573
    %2606 = vst [vmem:[#allocation5 + $0xa8] sm:$0xff] %v2574
    %2607 = vst [vmem:[#allocation5 + $0xb0] sm:$0xff] %v2575
    %2608 = vst [vmem:[#allocation5 + $0xb8] sm:$0xff] %v2576
    %2609 = vst [vmem:[#allocation5 + $0xc0] sm:$0xff] %v2577
    %2610 = vst [vmem:[#allocation5 + $0xc8] sm:$0xff] %v2578
    %2611 = vst [vmem:[#allocation5 + $0xd0] sm:$0xff] %v2579
    %2612 = vst [vmem:[#allocation5 + $0xd8] sm:$0xff] %v2580
    %2613 = vst [vmem:[#allocation5 + $0xe0] sm:$0xff] %v2581
    %2614 = vst [vmem:[#allocation5 + $0xe8] sm:$0xff] %v2582
    %2615 = vst [vmem:[#allocation5 + $0xf0] sm:$0xff] %v2583
    %2616 = vst [vmem:[#allocation5 + $0xf8] sm:$0xff] %v2584
    // Predicated region
    $region22: #{tpu_custom_call.1} parent=1 // pred_check
      _
    $region23: #{tpu_custom_call.1} parent=1 // pred_check_branch
      %2618 = sbr.rel (0) target = $region25
    $region24: #{tpu_custom_call.1} parent=1 // pred_region
      %s2620 = ssub.s32 4096, 4096
      %2621 = vsyncadd [#allocation4], %s2620
      %s2622 = sshll.u32 [#allocation5], 4
      %s2623 = int_to_ptr.vmem [resolvable:$true] %s2622
      %2628 = dma.vmem_to_hbm [thread:$0]  %s2623, 4096, %s4, [#allocation4], 128, 128, 8
    $region25: #{tpu_custom_call.1} parent=1 // pred_fallthru
      _
    // Predicated region
    $region26: #{tpu_custom_call.1} parent=1 // pred_check
      _
    $region27: #{tpu_custom_call.1} parent=1 // pred_check_branch
      %2630 = sbr.rel (0) target = $region29
    $region28: #{tpu_custom_call.1} parent=1 // pred_region
      %2631 = dma.done [#allocation4], 4096
    $region29: #{tpu_custom_call.1} parent=1 // pred_fallthru
      _
    %2632 = vsyncpa [#allocation3], 1
    %2633 = vsyncpa [#allocation4], 1

</llo_original>
